<compile_context>
chip_gen: v7x
topology: tpu7x:2x2x1
jax: 0.10.0
libtpu: 0.0.40
codegen_flags: <defaults>
</compile_context>

<pallas_src>
import functools
import math

import jax
import jax.numpy as jnp
from jax import lax
from jax.experimental import pallas as pl
from jax.experimental.pallas import tpu as pltpu


def _self_attention_1d_kernel(x_ref, gamma_ref, beta_ref, wqkv_ref, bqkv_ref,
                              wp_ref, bp_ref, o_ref, xn_ref, attn_ref, *,
                              num_heads, eps, seq_len, batch_per_block):
    """One block = `batch_per_block` batch elements, channel-rows layout (C, N).

    x_ref      : (C, N) input slab, N = batch_per_block * seq_len (lane-dense)
    gamma/beta : (C, 1) GroupNorm affine
    wqkv_ref   : (3C, C) fused q|k|v weight, (out, in) layout, q/k scale folded in
    bqkv_ref   : (3C, 1) fused bias (scale folded in)
    wp_ref     : (C, C) output projection, (out, in) layout
    bp_ref     : (C, 1)
    o_ref      : (C, N) output slab
    xn_ref     : (C, N) f32 scratch (normalized activations)
    attn_ref   : (C, N) f32 scratch (per-head attention outputs, slice-written)
    """
    C = x_ref.shape[0]
    L = seq_len
    head_dim = C // num_heads

    x = x_ref[...].astype(jnp.float32)                      # (C, N), residual
    gamma = gamma_ref[...]                                   # (C, 1)
    beta = beta_ref[...]                                      # (C, 1)

    # --- GroupNorm(num_groups=1): per-batch-element stats, single pass ---
    inv_n = 1.0 / (C * L)
    for bi in range(batch_per_block):                         # static unroll
        lo = bi * L
        xb = x[:, lo:lo + L]                                   # (C, L)
        s1 = jnp.sum(xb)
        s2 = jnp.sum(xb * xb)
        mean = s1 * inv_n
        var = s2 * inv_n - mean * mean
        inv_std = lax.rsqrt(var + eps)
        xn_ref[:, lo:lo + L] = (xb - mean) * inv_std * gamma + beta

    # --- fused Q/K/V projection: one (3C, C) @ (C, N) MXU matmul ---
    xn = xn_ref[...]                                           # (C, N)
    qkv = jnp.dot(wqkv_ref[...], xn,
                  preferred_element_type=jnp.float32) + bqkv_ref[...]   # (3C, N)

    # --- attention per batch element / head (scores kept transposed) ---
    for bi in range(batch_per_block):                          # static unroll
        t0 = bi * L
        for h in range(num_heads):                             # static unroll
            r0 = h * head_dim
            qt = qkv[r0:r0 + head_dim, t0:t0 + L]              # (hd, L) = q^T
            kt = qkv[C + r0:C + r0 + head_dim, t0:t0 + L]      # (hd, L) = k^T
            vt = qkv[2 * C + r0:2 * C + r0 + head_dim, t0:t0 + L]

            # st[j, i] = sum_d K[j, d] * Q[i, d]   (scale already folded in W)
            st = lax.dot_general(kt, qt, (((0,), (0,)), ((), ())),
                                 preferred_element_type=jnp.float32)    # (Lk, Lq)
            st = st - jnp.max(st, axis=0, keepdims=True)
            p = jnp.exp(st)                                     # unnormalized probs
            denom = jnp.sum(p, axis=0, keepdims=True)           # (1, Lq)

            # out^T (unnormalized): (hd, Lk) @ (Lk, Lq) -> (hd, Lq), standard MXU.
            o_un = jnp.dot(vt, p, preferred_element_type=jnp.float32)

            # EUP approx reciprocal + one Newton step (full f32 accuracy),
            # applied as a per-query row scale on the (hd, Lq) result.
            r = pl.reciprocal(denom, approx=True)
            r = r * (2.0 - denom * r)
            attn_ref[r0:r0 + head_dim, t0:t0 + L] = o_un * r

    # --- output projection + residual (dropout rate 0.0 -> identity) ---
    proj = jnp.dot(wp_ref[...], attn_ref[...],
                   preferred_element_type=jnp.float32) + bp_ref[...]    # (C, N)
    o_ref[...] = (proj + x).astype(o_ref.dtype)                # lane-dense store


def _pick_num_batch_blocks(batch, seq_len):
    """Default grid split.

    Two parallel grid steps let a dual-TensorCore chip (v7x) shard the batch,
    but only if each block keeps a lane-dense (multiple of 128) token axis.
    Otherwise fold the whole batch into one block (best for single-TC v5e/v6e
    and for tiny shapes like the self-test).
    """
    if batch % 2 == 0 and ((batch // 2) * seq_len) % 128 == 0:
        return 2
    return 1


def prepare_params(params, num_heads):
    """One-time host-side parameter fusion (reused for every forward call).

    * concatenates q|k|v into a single (3C, C) weight / (3C, 1) bias,
    * folds the dual q/k scale head_dim^-0.25 into those weights & biases,
    * transposes everything into (out, in) layout for the channel-rows kernel,
    * reshapes GroupNorm affine to (C, 1).
    """
    C = params["wq"].shape[0]
    head_dim = C // num_heads
    scale = 1.0 / math.sqrt(math.sqrt(head_dim))

    wqkv = jnp.concatenate([(params["wq"] * scale).T,
                            (params["wk"] * scale).T,
                            params["wv"].T], axis=0)                    # (3C, C)
    bqkv = jnp.concatenate([params["bq"] * scale,
                            params["bk"] * scale,
                            params["bv"]], axis=1).reshape(3 * C, 1)    # (3C, 1)
    return dict(
        gamma=params["gamma"].reshape(C, 1),
        beta=params["beta"].reshape(C, 1),
        wqkv=wqkv, bqkv=bqkv,
        wp=params["wp"].T,                                              # (out, in)
        bp=params["bp"].reshape(C, 1),
    )


def self_attention_1d(hidden_states, fused, *, num_heads=1, eps=1e-5,
                      num_batch_blocks=None):
    """hidden_states: (B, C, L) float32.  `fused` from prepare_params."""
    B, C, L = hidden_states.shape
    assert C % num_heads == 0
    if num_batch_blocks is None:
        num_batch_blocks = _pick_num_batch_blocks(B, L)
    assert B % num_batch_blocks == 0
    bb = B // num_batch_blocks          # batch elements per grid step
    N = bb * L                          # tokens (lane axis) per block

    # Wrapper-side layout plumbing: lane-dense (C, B*L) slab in and out.
    x2 = hidden_states.transpose(1, 0, 2).reshape(C, B * L)

    kernel = functools.partial(_self_attention_1d_kernel,
                               num_heads=num_heads, eps=eps,
                               seq_len=L, batch_per_block=bb)

    const = lambda shape: pl.BlockSpec(shape, lambda i: (0, 0))
    slab = pl.BlockSpec((C, N), lambda i: (0, i))

    out2 = pl.pallas_call(
        kernel,
        out_shape=jax.ShapeDtypeStruct((C, B * L), hidden_states.dtype),
        grid=(num_batch_blocks,),
        in_specs=[
            slab,                       # activations
            const((C, 1)),              # gamma
            const((C, 1)),              # beta
            const((3 * C, C)),          # fused qkv weight
            const((3 * C, 1)),          # fused qkv bias
            const((C, C)),              # proj weight
            const((C, 1)),              # proj bias
        ],
        out_specs=slab,
        scratch_shapes=[pltpu.VMEM((C, N), jnp.float32),   # normalized activations
                        pltpu.VMEM((C, N), jnp.float32)],  # attention outputs
        compiler_params=pltpu.CompilerParams(
            dimension_semantics=("parallel",)),
    )(x2, fused["gamma"], fused["beta"], fused["wqkv"], fused["bqkv"],
      fused["wp"], fused["bp"])

    return out2.reshape(C, B, L).transpose(1, 0, 2)


def init_params(key, channels):
    """Deterministic synthetic parameters with the module's shapes (x @ W + b)."""
    ks = jax.random.split(key, 10)
    s = 1.0 / math.sqrt(channels)

    def lin(kw, kb):
        w = jax.random.normal(kw, (channels, channels), jnp.float32) * s
        b = jax.random.normal(kb, (1, channels), jnp.float32) * s
        return w, b

    wq, bq = lin(ks[0], ks[1])
    wk, bk = lin(ks[2], ks[3])
    wv, bv = lin(ks[4], ks[5])
    wp, bp = lin(ks[6], ks[7])
    gamma = 1.0 + 0.1 * jax.random.normal(ks[8], (1, channels), jnp.float32)
    beta = 0.1 * jax.random.normal(ks[9], (1, channels), jnp.float32)
    return dict(gamma=gamma, beta=beta, wq=wq, bq=bq, wk=wk, bk=bk,
                wv=wv, bv=bv, wp=wp, bp=bp)


def _reference(hs, params, num_heads=1, eps=1e-5):
    """Pure-JAX reference of the PyTorch forward (temb=None path)."""
    B, C, L = hs.shape
    hi = jax.lax.Precision.HIGHEST
    mean = hs.mean(axis=(1, 2), keepdims=True)
    var = jnp.mean(jnp.square(hs - mean), axis=(1, 2), keepdims=True)
    xn = (hs - mean) / jnp.sqrt(var + eps)
    xn = xn * params["gamma"][0][None, :, None] + params["beta"][0][None, :, None]
    xt = jnp.transpose(xn, (0, 2, 1))                                    # (B, L, C)
    q = jnp.matmul(xt, params["wq"], precision=hi) + params["bq"]
    k = jnp.matmul(xt, params["wk"], precision=hi) + params["bk"]
    v = jnp.matmul(xt, params["wv"], precision=hi) + params["bv"]
    hd = C // num_heads

    def split(t):
        return t.reshape(B, L, num_heads, hd).transpose(0, 2, 1, 3)

    q, k, v = split(q), split(k), split(v)
    scale = 1.0 / math.sqrt(math.sqrt(hd))
    s = jnp.einsum("bhqd,bhkd->bhqk", q * scale, k * scale, precision=hi)
    p = jax.nn.softmax(s, axis=-1)
    o = jnp.einsum("bhqk,bhkd->bhqd", p, v, precision=hi)
    o = o.transpose(0, 2, 1, 3).reshape(B, L, C)
    o = jnp.matmul(o, params["wp"], precision=hi) + params["bp"]
    return jnp.transpose(o, (0, 2, 1)) + hs


if __name__ == "__main__":
    # Small shapes consistent with the module: (B, C, L) = (2, 32, 64), 1 head.
    B, C, L = 2, 32, 64
    n_head = 1

    key = jax.random.PRNGKey(0)
    k_x, k_p = jax.random.split(key)
    hidden_states = jax.random.normal(k_x, (B, C, L), jnp.float32)
    params = init_params(k_p, C)
    fused = prepare_params(params, num_heads=n_head)

    out = self_attention_1d(hidden_states, fused, num_heads=n_head)
    out = jax.block_until_ready(out)

    ref = _reference(hidden_states, params, num_heads=n_head)
    assert out.shape == (B, C, L), out.shape
    max_err = float(jnp.max(jnp.abs(out - ref)))
    assert jnp.allclose(out, ref, atol=5e-4, rtol=5e-4), max_err

    print("KERNEL_OK")
</pallas_src>

<mosaic_0001>
module attributes {stable_mosaic.version = 11 : i64} {
  func.func @_self_attention_1d_kernel(%arg0: i32, %arg1: memref<32x128xf32, #tpu.memory_space<vmem>>, %arg2: memref<32x1xf32, #tpu.memory_space<vmem>>, %arg3: memref<32x1xf32, #tpu.memory_space<vmem>>, %arg4: memref<96x32xf32, #tpu.memory_space<vmem>>, %arg5: memref<96x1xf32, #tpu.memory_space<vmem>>, %arg6: memref<32x32xf32, #tpu.memory_space<vmem>>, %arg7: memref<32x1xf32, #tpu.memory_space<vmem>>, %arg8: memref<32x128xf32, #tpu.memory_space<vmem>>, %arg9: memref<32x128xf32, #tpu.memory_space<vmem>>, %arg10: memref<32x128xf32, #tpu.memory_space<vmem>>) attributes {dimension_semantics = [#tpu.dimension_semantics<parallel>], iteration_bounds = array<i64: 1>, scalar_prefetch = 0 : i64, scratch_operands = 2 : i64, tpu.core_type = #tpu.core_type<tc>, window_params = [{transform_indices = @transform_0, window_bounds = array<i64: 32, 128>}, {pipeline_mode = #tpu.pipeline_mode<synchronous>, transform_indices = @transform_1, window_bounds = array<i64: 32, 1>}, {pipeline_mode = #tpu.pipeline_mode<synchronous>, transform_indices = @transform_2, window_bounds = array<i64: 32, 1>}, {pipeline_mode = #tpu.pipeline_mode<synchronous>, transform_indices = @transform_3, window_bounds = array<i64: 96, 32>}, {pipeline_mode = #tpu.pipeline_mode<synchronous>, transform_indices = @transform_4, window_bounds = array<i64: 96, 1>}, {pipeline_mode = #tpu.pipeline_mode<synchronous>, transform_indices = @transform_5, window_bounds = array<i64: 32, 32>}, {pipeline_mode = #tpu.pipeline_mode<synchronous>, transform_indices = @transform_6, window_bounds = array<i64: 32, 1>}, {transform_indices = @transform_7, window_bounds = array<i64: 32, 128>}]} {
    %c0 = arith.constant 0 : index
    %c0_0 = arith.constant 0 : index
    %0 = vector.load %arg1[%c0, %c0_0] : memref<32x128xf32, #tpu.memory_space<vmem>>, vector<32x128xf32>
    %c0_1 = arith.constant 0 : index
    %c0_2 = arith.constant 0 : index
    %1 = vector.load %arg2[%c0_1, %c0_2] : memref<32x1xf32, #tpu.memory_space<vmem>>, vector<32x1xf32>
    %c0_3 = arith.constant 0 : index
    %c0_4 = arith.constant 0 : index
    %2 = vector.load %arg3[%c0_3, %c0_4] : memref<32x1xf32, #tpu.memory_space<vmem>>, vector<32x1xf32>
    %3 = vector.extract_strided_slice %0 {offsets = [0, 0], sizes = [32, 64], strides = [1, 1]} : vector<32x128xf32> to vector<32x64xf32>
    %4 = vector.shape_cast %3 : vector<32x64xf32> to vector<1x32x64xf32>
    %cst = arith.constant dense<0.000000e+00> : vector<1xf32>
    %5 = vector.multi_reduction <add>, %4, %cst [1, 2] : vector<1x32x64xf32> to vector<1xf32>
    %6 = vector.shape_cast %5 : vector<1xf32> to vector<1x1x1xf32>
    %7 = vector.extract %6[0, 0, 0] : f32 from vector<1x1x1xf32>
    %8 = arith.mulf %3, %3 : vector<32x64xf32>
    %9 = vector.shape_cast %8 : vector<32x64xf32> to vector<1x32x64xf32>
    %cst_5 = arith.constant dense<0.000000e+00> : vector<1xf32>
    %10 = vector.multi_reduction <add>, %9, %cst_5 [1, 2] : vector<1x32x64xf32> to vector<1xf32>
    %11 = vector.shape_cast %10 : vector<1xf32> to vector<1x1x1xf32>
    %12 = vector.extract %11[0, 0, 0] : f32 from vector<1x1x1xf32>
    %cst_6 = arith.constant 4.8828125E-4 : f32
    %13 = arith.mulf %7, %cst_6 : f32
    %cst_7 = arith.constant 4.8828125E-4 : f32
    %14 = arith.mulf %12, %cst_7 : f32
    %15 = arith.mulf %13, %13 : f32
    %16 = arith.subf %14, %15 : f32
    %cst_8 = arith.constant 9.99999974E-6 : f32
    %17 = arith.addf %16, %cst_8 : f32
    %18 = math.rsqrt %17 : f32
    %19 = vector.broadcast %13 : f32 to vector<32x64xf32>
    %20 = arith.subf %3, %19 : vector<32x64xf32>
    %21 = vector.broadcast %18 : f32 to vector<32x64xf32>
    %22 = arith.mulf %20, %21 : vector<32x64xf32>
    %23 = vector.broadcast %1 : vector<32x1xf32> to vector<32x64xf32>
    %24 = arith.mulf %22, %23 : vector<32x64xf32>
    %25 = vector.broadcast %2 : vector<32x1xf32> to vector<32x64xf32>
    %26 = arith.addf %24, %25 : vector<32x64xf32>
    %c0_9 = arith.constant 0 : index
    %c0_10 = arith.constant 0 : index
    %27 = vector.load %arg9[%c0_9, %c0_10] : memref<32x128xf32, #tpu.memory_space<vmem>>, vector<32x64xf32>
    tpu.vector_store %arg9[%c0_9, %c0_10], %26 {strides = array<i32>} : memref<32x128xf32, #tpu.memory_space<vmem>>, vector<32x64xf32>,
    %28 = vector.extract_strided_slice %0 {offsets = [0, 64], sizes = [32, 64], strides = [1, 1]} : vector<32x128xf32> to vector<32x64xf32>
    %29 = vector.shape_cast %28 : vector<32x64xf32> to vector<1x32x64xf32>
    %cst_11 = arith.constant dense<0.000000e+00> : vector<1xf32>
    %30 = vector.multi_reduction <add>, %29, %cst_11 [1, 2] : vector<1x32x64xf32> to vector<1xf32>
    %31 = vector.shape_cast %30 : vector<1xf32> to vector<1x1x1xf32>
    %32 = vector.extract %31[0, 0, 0] : f32 from vector<1x1x1xf32>
    %33 = arith.mulf %28, %28 : vector<32x64xf32>
    %34 = vector.shape_cast %33 : vector<32x64xf32> to vector<1x32x64xf32>
    %cst_12 = arith.constant dense<0.000000e+00> : vector<1xf32>
    %35 = vector.multi_reduction <add>, %34, %cst_12 [1, 2] : vector<1x32x64xf32> to vector<1xf32>
    %36 = vector.shape_cast %35 : vector<1xf32> to vector<1x1x1xf32>
    %37 = vector.extract %36[0, 0, 0] : f32 from vector<1x1x1xf32>
    %cst_13 = arith.constant 4.8828125E-4 : f32
    %38 = arith.mulf %32, %cst_13 : f32
    %cst_14 = arith.constant 4.8828125E-4 : f32
    %39 = arith.mulf %37, %cst_14 : f32
    %40 = arith.mulf %38, %38 : f32
    %41 = arith.subf %39, %40 : f32
    %cst_15 = arith.constant 9.99999974E-6 : f32
    %42 = arith.addf %41, %cst_15 : f32
    %43 = math.rsqrt %42 : f32
    %44 = vector.broadcast %38 : f32 to vector<32x64xf32>
    %45 = arith.subf %28, %44 : vector<32x64xf32>
    %46 = vector.broadcast %43 : f32 to vector<32x64xf32>
    %47 = arith.mulf %45, %46 : vector<32x64xf32>
    %48 = vector.broadcast %1 : vector<32x1xf32> to vector<32x64xf32>
    %49 = arith.mulf %47, %48 : vector<32x64xf32>
    %50 = vector.broadcast %2 : vector<32x1xf32> to vector<32x64xf32>
    %51 = arith.addf %49, %50 : vector<32x64xf32>
    %c0_16 = arith.constant 0 : index
    %c64 = arith.constant 64 : index
    %52 = vector.load %arg9[%c0_16, %c64] : memref<32x128xf32, #tpu.memory_space<vmem>>, vector<32x64xf32>
    tpu.vector_store %arg9[%c0_16, %c64], %51 {strides = array<i32>} : memref<32x128xf32, #tpu.memory_space<vmem>>, vector<32x64xf32>,
    %c0_17 = arith.constant 0 : index
    %c0_18 = arith.constant 0 : index
    %53 = vector.load %arg9[%c0_17, %c0_18] : memref<32x128xf32, #tpu.memory_space<vmem>>, vector<32x128xf32>
    %c0_19 = arith.constant 0 : index
    %c0_20 = arith.constant 0 : index
    %54 = vector.load %arg4[%c0_19, %c0_20] : memref<96x32xf32, #tpu.memory_space<vmem>>, vector<96x32xf32>
    %cst_21 = arith.constant dense<0.000000e+00> : vector<96x128xf32>
    %55 = tpu.matmul %54, %53, %cst_21 {dimension_numbers = #tpu.dot_dimension_numbers<[1], [0], [0], [1], [0, 0, 1, 1], [], []>} : vector<96x32xf32>, vector<32x128xf32>, vector<96x128xf32> -> vector<96x128xf32>
    %c0_22 = arith.constant 0 : index
    %c0_23 = arith.constant 0 : index
    %56 = vector.load %arg5[%c0_22, %c0_23] : memref<96x1xf32, #tpu.memory_space<vmem>>, vector<96x1xf32>
    %57 = vector.broadcast %56 : vector<96x1xf32> to vector<96x128xf32>
    %58 = arith.addf %55, %57 : vector<96x128xf32>
    %59 = vector.extract_strided_slice %58 {offsets = [0, 0], sizes = [32, 64], strides = [1, 1]} : vector<96x128xf32> to vector<32x64xf32>
    %60 = vector.extract_strided_slice %58 {offsets = [32, 0], sizes = [32, 64], strides = [1, 1]} : vector<96x128xf32> to vector<32x64xf32>
    %61 = vector.extract_strided_slice %58 {offsets = [64, 0], sizes = [32, 64], strides = [1, 1]} : vector<96x128xf32> to vector<32x64xf32>
    %cst_24 = arith.constant dense<0.000000e+00> : vector<64x64xf32>
    %62 = tpu.matmul %60, %59, %cst_24 {dimension_numbers = #tpu.dot_dimension_numbers<[0], [0], [1], [1], [0, 1, 1, 1], [], []>} : vector<32x64xf32>, vector<32x64xf32>, vector<64x64xf32> -> vector<64x64xf32>
    %cst_25 = arith.constant dense<0xFF800000> : vector<64xf32>
    %63 = vector.multi_reduction <maximumf>, %62, %cst_25 [0] : vector<64x64xf32> to vector<64xf32>
    %64 = vector.shape_cast %63 : vector<64xf32> to vector<1x64xf32>
    %65 = vector.broadcast %64 : vector<1x64xf32> to vector<64x64xf32>
    %66 = arith.subf %62, %65 : vector<64x64xf32>
    %67 = math.exp %66 : vector<64x64xf32>
    %cst_26 = arith.constant dense<0.000000e+00> : vector<64xf32>
    %68 = vector.multi_reduction <add>, %67, %cst_26 [0] : vector<64x64xf32> to vector<64xf32>
    %69 = vector.shape_cast %68 : vector<64xf32> to vector<1x64xf32>
    %cst_27 = arith.constant dense<0.000000e+00> : vector<32x64xf32>
    %70 = tpu.matmul %61, %67, %cst_27 {dimension_numbers = #tpu.dot_dimension_numbers<[1], [0], [0], [1], [0, 0, 1, 1], [], []>} : vector<32x64xf32>, vector<64x64xf32>, vector<32x64xf32> -> vector<32x64xf32>
    %71 = tpu.reciprocal %69 {approx = true} : vector<1x64xf32> -> vector<1x64xf32>
    %72 = arith.mulf %69, %71 : vector<1x64xf32>
    %cst_28 = arith.constant 2.000000e+00 : f32
    %73 = vector.broadcast %cst_28 : f32 to vector<1x64xf32>
    %74 = arith.subf %73, %72 : vector<1x64xf32>
    %75 = arith.mulf %71, %74 : vector<1x64xf32>
    %76 = vector.broadcast %75 : vector<1x64xf32> to vector<32x64xf32>
    %77 = arith.mulf %70, %76 : vector<32x64xf32>
    %c0_29 = arith.constant 0 : index
    %c0_30 = arith.constant 0 : index
    %78 = vector.load %arg10[%c0_29, %c0_30] : memref<32x128xf32, #tpu.memory_space<vmem>>, vector<32x64xf32>
    tpu.vector_store %arg10[%c0_29, %c0_30], %77 {strides = array<i32>} : memref<32x128xf32, #tpu.memory_space<vmem>>, vector<32x64xf32>,
    %79 = vector.extract_strided_slice %58 {offsets = [0, 64], sizes = [32, 64], strides = [1, 1]} : vector<96x128xf32> to vector<32x64xf32>
    %80 = vector.extract_strided_slice %58 {offsets = [32, 64], sizes = [32, 64], strides = [1, 1]} : vector<96x128xf32> to vector<32x64xf32>
    %81 = vector.extract_strided_slice %58 {offsets = [64, 64], sizes = [32, 64], strides = [1, 1]} : vector<96x128xf32> to vector<32x64xf32>
    %cst_31 = arith.constant dense<0.000000e+00> : vector<64x64xf32>
    %82 = tpu.matmul %80, %79, %cst_31 {dimension_numbers = #tpu.dot_dimension_numbers<[0], [0], [1], [1], [0, 1, 1, 1], [], []>} : vector<32x64xf32>, vector<32x64xf32>, vector<64x64xf32> -> vector<64x64xf32>
    %cst_32 = arith.constant dense<0xFF800000> : vector<64xf32>
    %83 = vector.multi_reduction <maximumf>, %82, %cst_32 [0] : vector<64x64xf32> to vector<64xf32>
    %84 = vector.shape_cast %83 : vector<64xf32> to vector<1x64xf32>
    %85 = vector.broadcast %84 : vector<1x64xf32> to vector<64x64xf32>
    %86 = arith.subf %82, %85 : vector<64x64xf32>
    %87 = math.exp %86 : vector<64x64xf32>
    %cst_33 = arith.constant dense<0.000000e+00> : vector<64xf32>
    %88 = vector.multi_reduction <add>, %87, %cst_33 [0] : vector<64x64xf32> to vector<64xf32>
    %89 = vector.shape_cast %88 : vector<64xf32> to vector<1x64xf32>
    %cst_34 = arith.constant dense<0.000000e+00> : vector<32x64xf32>
    %90 = tpu.matmul %81, %87, %cst_34 {dimension_numbers = #tpu.dot_dimension_numbers<[1], [0], [0], [1], [0, 0, 1, 1], [], []>} : vector<32x64xf32>, vector<64x64xf32>, vector<32x64xf32> -> vector<32x64xf32>
    %91 = tpu.reciprocal %89 {approx = true} : vector<1x64xf32> -> vector<1x64xf32>
    %92 = arith.mulf %89, %91 : vector<1x64xf32>
    %cst_35 = arith.constant 2.000000e+00 : f32
    %93 = vector.broadcast %cst_35 : f32 to vector<1x64xf32>
    %94 = arith.subf %93, %92 : vector<1x64xf32>
    %95 = arith.mulf %91, %94 : vector<1x64xf32>
    %96 = vector.broadcast %95 : vector<1x64xf32> to vector<32x64xf32>
    %97 = arith.mulf %90, %96 : vector<32x64xf32>
    %c0_36 = arith.constant 0 : index
    %c64_37 = arith.constant 64 : index
    %98 = vector.load %arg10[%c0_36, %c64_37] : memref<32x128xf32, #tpu.memory_space<vmem>>, vector<32x64xf32>
    tpu.vector_store %arg10[%c0_36, %c64_37], %97 {strides = array<i32>} : memref<32x128xf32, #tpu.memory_space<vmem>>, vector<32x64xf32>,
    %c0_38 = arith.constant 0 : index
    %c0_39 = arith.constant 0 : index
    %99 = vector.load %arg6[%c0_38, %c0_39] : memref<32x32xf32, #tpu.memory_space<vmem>>, vector<32x32xf32>
    %c0_40 = arith.constant 0 : index
    %c0_41 = arith.constant 0 : index
    %100 = vector.load %arg10[%c0_40, %c0_41] : memref<32x128xf32, #tpu.memory_space<vmem>>, vector<32x128xf32>
    %cst_42 = arith.constant dense<0.000000e+00> : vector<32x128xf32>
    %101 = tpu.matmul %99, %100, %cst_42 {dimension_numbers = #tpu.dot_dimension_numbers<[1], [0], [0], [1], [0, 0, 1, 1], [], []>} : vector<32x32xf32>, vector<32x128xf32>, vector<32x128xf32> -> vector<32x128xf32>
    %c0_43 = arith.constant 0 : index
    %c0_44 = arith.constant 0 : index
    %102 = vector.load %arg7[%c0_43, %c0_44] : memref<32x1xf32, #tpu.memory_space<vmem>>, vector<32x1xf32>
    %103 = vector.broadcast %102 : vector<32x1xf32> to vector<32x128xf32>
    %104 = arith.addf %101, %103 : vector<32x128xf32>
    %105 = arith.addf %104, %0 : vector<32x128xf32>
    %c0_45 = arith.constant 0 : index
    %c0_46 = arith.constant 0 : index
    %106 = vector.load %arg8[%c0_45, %c0_46] : memref<32x128xf32, #tpu.memory_space<vmem>>, vector<32x128xf32>
    tpu.vector_store %arg8[%c0_45, %c0_46], %105 {strides = array<i32>} : memref<32x128xf32, #tpu.memory_space<vmem>>, vector<32x128xf32>,
    return
  }
  func.func @transform_0(%arg0: i32) -> (i32, i32) {
    %c0_i32 = arith.constant 0 : i32
    %c0_i32_0 = arith.constant 0 : i32
    return %c0_i32, %arg0 : i32, i32
  }
  func.func @transform_1(%arg0: i32) -> (i32, i32) {
    %c0_i32 = arith.constant 0 : i32
    %c0_i32_0 = arith.constant 0 : i32
    %c0_i32_1 = arith.constant 0 : i32
    return %c0_i32, %c0_i32_0 : i32, i32
  }
  func.func @transform_2(%arg0: i32) -> (i32, i32) {
    %c0_i32 = arith.constant 0 : i32
    %c0_i32_0 = arith.constant 0 : i32
    %c0_i32_1 = arith.constant 0 : i32
    return %c0_i32, %c0_i32_0 : i32, i32
  }
  func.func @transform_3(%arg0: i32) -> (i32, i32) {
    %c0_i32 = arith.constant 0 : i32
    %c0_i32_0 = arith.constant 0 : i32
    %c0_i32_1 = arith.constant 0 : i32
    return %c0_i32, %c0_i32_0 : i32, i32
  }
  func.func @transform_4(%arg0: i32) -> (i32, i32) {
    %c0_i32 = arith.constant 0 : i32
    %c0_i32_0 = arith.constant 0 : i32
    %c0_i32_1 = arith.constant 0 : i32
    return %c0_i32, %c0_i32_0 : i32, i32
  }
  func.func @transform_5(%arg0: i32) -> (i32, i32) {
    %c0_i32 = arith.constant 0 : i32
    %c0_i32_0 = arith.constant 0 : i32
    %c0_i32_1 = arith.constant 0 : i32
    return %c0_i32, %c0_i32_0 : i32, i32
  }
  func.func @transform_6(%arg0: i32) -> (i32, i32) {
    %c0_i32 = arith.constant 0 : i32
    %c0_i32_0 = arith.constant 0 : i32
    %c0_i32_1 = arith.constant 0 : i32
    return %c0_i32, %c0_i32_0 : i32, i32
  }
  func.func @transform_7(%arg0: i32) -> (i32, i32) {
    %c0_i32 = arith.constant 0 : i32
    %c0_i32_0 = arith.constant 0 : i32
    return %c0_i32, %arg0 : i32, i32
  }
}

</mosaic_0001>

<llo_original>
// kernel: tpu_custom_call.1
$region0: #{tpu_custom_call.1}
  #allocation0 [shape = 'u32[]', space=smem, size = 0x4, offset = 0x4, fixed_abs, tag = 'smem constant byte address 0x4 - core index']
  #allocation1 [shape = 'u32[144,128]{1,0:T(1,128)}', space=vmem, size = 0x12000, scoped, tag = 'internal scratch']
  #allocation2 [shape = 'f32[32,128]{1,0:T(8,128)}', space=vmem, size = 0x4000, scoped, tag = 'scratch operand']
  #allocation3 [shape = 'f32[32,128]{1,0:T(8,128)}', space=vmem, size = 0x4000, scoped, tag = 'scratch operand']
  %s0 = inlined_call_operand.vmem [shape: f32[32,128], index: 0, kind: input, shape index: {}]
  %s1 = inlined_call_operand.vmem [shape: f32[32,1], index: 1, kind: input, shape index: {}]
  %s2 = inlined_call_operand.vmem [shape: f32[32,1], index: 2, kind: input, shape index: {}]
  %s3 = inlined_call_operand.vmem [shape: f32[96,32], index: 3, kind: input, shape index: {}]
  %s4 = inlined_call_operand.vmem [shape: f32[96,1], index: 4, kind: input, shape index: {}]
  %s5 = inlined_call_operand.vmem [shape: f32[32,32], index: 5, kind: input, shape index: {}]
  %s6 = inlined_call_operand.vmem [shape: f32[32,1], index: 6, kind: input, shape index: {}]
  %s7 = inlined_call_operand.hbm [shape: f32[32,128], index: 7, kind: output, shape index: {}]
  %s8 = sld [smem:[#allocation0]]
  $region38: #{tpu_custom_call.1} parent=0
    _
  %s10 = ssub.s32 1, %s8
  %s11 = scalar_select 0, %s10, %s8
  $region1: #{tpu_custom_call.1} parent=0
    #allocation4 [shape = 'u8[16384]{0}', space=vmem, size = 0x4000, scoped, tag = 'output window, operand 0, single buffered']
    #allocation5 [shape = 's32[1]{0}', space=sflag, size = 0x4, scoped, tag = 'scoped memory for tpu_custom_call.1']
    %12 = vsyncpa [#allocation5], 0
    // Predicated region
    $region2: #{tpu_custom_call.1} parent=1 // pred_check
      _
    $region3: #{tpu_custom_call.1} parent=1 // pred_check_branch
      %14 = sbr.rel (0) target = $region5
    $region4: #{tpu_custom_call.1} parent=1 // pred_region
      _
    $region5: #{tpu_custom_call.1} parent=1 // pred_fallthru
      _
    // Predicated region
    $region6: #{tpu_custom_call.1} parent=1 // pred_check
      _
    $region7: #{tpu_custom_call.1} parent=1 // pred_check_branch
      %16 = sbr.rel (0) target = $region9
    $region8: #{tpu_custom_call.1} parent=1 // pred_region
      _
    $region9: #{tpu_custom_call.1} parent=1 // pred_fallthru
      _
    // Predicated region
    $region10: #{tpu_custom_call.1} parent=1 // pred_check
      _
    $region11: #{tpu_custom_call.1} parent=1 // pred_check_branch
      %18 = sbr.rel (0) target = $region13
    $region12: #{tpu_custom_call.1} parent=1 // pred_region
      _
    $region13: #{tpu_custom_call.1} parent=1 // pred_fallthru
      _
    // Predicated region
    $region14: #{tpu_custom_call.1} parent=1 // pred_check
      _
    $region15: #{tpu_custom_call.1} parent=1 // pred_check_branch
      %20 = sbr.rel (0) target = $region17
    $region16: #{tpu_custom_call.1} parent=1 // pred_region
      _
    $region17: #{tpu_custom_call.1} parent=1 // pred_fallthru
      _
    // Predicated region
    $region18: #{tpu_custom_call.1} parent=1 // pred_check
      _
    $region19: #{tpu_custom_call.1} parent=1 // pred_check_branch
      %22 = sbr.rel (0) target = $region21
    $region20: #{tpu_custom_call.1} parent=1 // pred_region
      _
    $region21: #{tpu_custom_call.1} parent=1 // pred_fallthru
      _
    // Predicated region
    $region22: #{tpu_custom_call.1} parent=1 // pred_check
      _
    $region23: #{tpu_custom_call.1} parent=1 // pred_check_branch
      %24 = sbr.rel (0) target = $region25
    $region24: #{tpu_custom_call.1} parent=1 // pred_region
      _
    $region25: #{tpu_custom_call.1} parent=1 // pred_fallthru
      _
    // Predicated region
    $region26: #{tpu_custom_call.1} parent=1 // pred_check
      _
    $region27: #{tpu_custom_call.1} parent=1 // pred_check_branch
      %26 = sbr.rel (0) target = $region29
    $region28: #{tpu_custom_call.1} parent=1 // pred_region
      _
    $region29: #{tpu_custom_call.1} parent=1 // pred_fallthru
      _
    %v27 = vld [vmem:[%s0] sm:$0xff]
    %v28 = vld [vmem:[%s0 + $0x8] sm:$0xff]
    %v29 = vld [vmem:[%s0 + $0x10] sm:$0xff]
    %v30 = vld [vmem:[%s0 + $0x18] sm:$0xff]
    %v31 = vld [vmem:[%s1] sm:$0xff]
    %v32 = vld [vmem:[%s1 + $0x8] sm:$0xff]
    %v33 = vld [vmem:[%s1 + $0x10] sm:$0xff]
    %v34 = vld [vmem:[%s1 + $0x18] sm:$0xff]
    %v35 = vld [vmem:[%s2] sm:$0xff]
    %v36 = vld [vmem:[%s2 + $0x8] sm:$0xff]
    %v37 = vld [vmem:[%s2 + $0x10] sm:$0xff]
    %v38 = vld [vmem:[%s2 + $0x18] sm:$0xff]
    %vm39 = vcmask 523264
    %v40 = vsel %vm39, %v27, 0.0
    %v41 = vsel %vm39, %v28, 0.0
    %v42 = vadd.f32 %v40, %v41
    %v43 = vsel %vm39, %v29, 0.0
    %v44 = vadd.f32 %v42, %v43
    %v45 = vsel %vm39, %v30, 0.0
    %v46 = vadd.f32 %v44, %v45
    %47 = vadd.xlane.f32.xlu0 %v46
    %v48 = vpop.xlane.xlu0 %47
    %v49 = vrot.slane %v48, 4
    %v50 = vadd.f32 %v48, %v49
    %v51 = vrot.slane %v50, 2
    %v52 = vadd.f32 %v50, %v51
    %v53 = vrot.slane %v52, 1
    %v54 = vadd.f32 %v52, %v53
    %s55 = vtos %v54
    %v56 = vmul.f32 %v27, %v27
    %v57 = vmul.f32 %v28, %v28
    %v58 = vmul.f32 %v29, %v29
    %v59 = vmul.f32 %v30, %v30
    %v60 = vsel %vm39, %v56, 0.0
    %v61 = vsel %vm39, %v57, 0.0
    %v62 = vadd.f32 %v60, %v61
    %v63 = vsel %vm39, %v58, 0.0
    %v64 = vadd.f32 %v62, %v63
    %v65 = vsel %vm39, %v59, 0.0
    %v66 = vadd.f32 %v64, %v65
    %67 = vadd.xlane.f32.xlu0 %v66
    %v68 = vpop.xlane.xlu0 %67
    %v69 = vrot.slane %v68, 4
    %v70 = vadd.f32 %v68, %v69
    %v71 = vrot.slane %v70, 2
    %v72 = vadd.f32 %v70, %v71
    %v73 = vrot.slane %v72, 1
    %v74 = vadd.f32 %v72, %v73
    %s75 = vtos %v74
    %s76 = smul.f32 %s55, 0.00048828125
    %s77 = smul.f32 %s75, 0.00048828125
    %s78 = smul.f32 %s76, %s76
    %s79 = ssub.f32 %s77, %s78
    %s80 = sadd.f32 %s79, 1e-05
    %v81 = vstv %s80
    %v82 = vrsqrt.pop %v81
    %s83 = vtos %v82
    %v84 = vstv %s76
    %v85 = vsub.f32 %v27, %v84
    %v86 = vsub.f32 %v28, %v84
    %v87 = vsub.f32 %v29, %v84
    %v88 = vsub.f32 %v30, %v84
    %v89 = vstv %s83
    %v90 = vmul.f32 %v85, %v89
    %v91 = vmul.f32 %v86, %v89
    %v92 = vmul.f32 %v87, %v89
    %v93 = vmul.f32 %v88, %v89
    %95 = vset.pattern.permute.xlu0 0
    %96 = vperm.xlu0 %95, %v31
    %v97 = vpop.permute.xlu0 %96
    %100 = vset.pattern.permute.xlu0 0
    %101 = vperm.xlu0 %100, %v32
    %v102 = vpop.permute.xlu0 %101
    %105 = vset.pattern.permute.xlu0 0
    %106 = vperm.xlu0 %105, %v33
    %v107 = vpop.permute.xlu0 %106
    %110 = vset.pattern.permute.xlu0 0
    %111 = vperm.xlu0 %110, %v34
    %v112 = vpop.permute.xlu0 %111
    %v114 = vmul.f32 %v90, %v97
    %v115 = vmul.f32 %v91, %v102
    %v116 = vmul.f32 %v92, %v107
    %v117 = vmul.f32 %v93, %v112
    %119 = vset.pattern.permute.xlu0 0
    %120 = vperm.xlu0 %119, %v35
    %v121 = vpop.permute.xlu0 %120
    %124 = vset.pattern.permute.xlu0 0
    %125 = vperm.xlu0 %124, %v36
    %v126 = vpop.permute.xlu0 %125
    %129 = vset.pattern.permute.xlu0 0
    %130 = vperm.xlu0 %129, %v37
    %v131 = vpop.permute.xlu0 %130
    %134 = vset.pattern.permute.xlu0 0
    %135 = vperm.xlu0 %134, %v38
    %v136 = vpop.permute.xlu0 %135
    %v138 = vadd.f32 %v114, %v121
    %v139 = vadd.f32 %v115, %v126
    %v140 = vadd.f32 %v116, %v131
    %v141 = vadd.f32 %v117, %v136
    %142 = vst.msk [vmem:[#allocation2] sm:$0xff] %vm39, %v138
    %143 = vst.msk [vmem:[#allocation2 + $0x8] sm:$0xff] %vm39, %v139
    %144 = vst.msk [vmem:[#allocation2 + $0x10] sm:$0xff] %vm39, %v140
    %145 = vst.msk [vmem:[#allocation2 + $0x18] sm:$0xff] %vm39, %v141
    %150 = vrot.lane.b32.xlu0 %v27, 64
    %v151 = vpop.permute.xlu0 %150
    %152 = vrot.lane.b32.xlu0 %v28, 64
    %v153 = vpop.permute.xlu0 %152
    %154 = vrot.lane.b32.xlu0 %v29, 64
    %v155 = vpop.permute.xlu0 %154
    %156 = vrot.lane.b32.xlu0 %v30, 64
    %v157 = vpop.permute.xlu0 %156
    %v162 = vsel %vm39, %v151, 0.0
    %v163 = vsel %vm39, %v153, 0.0
    %v164 = vadd.f32 %v162, %v163
    %v165 = vsel %vm39, %v155, 0.0
    %v166 = vadd.f32 %v164, %v165
    %v167 = vsel %vm39, %v157, 0.0
    %v168 = vadd.f32 %v166, %v167
    %169 = vadd.xlane.f32.xlu0 %v168
    %v170 = vpop.xlane.xlu0 %169
    %v171 = vrot.slane %v170, 4
    %v172 = vadd.f32 %v170, %v171
    %v173 = vrot.slane %v172, 2
    %v174 = vadd.f32 %v172, %v173
    %v175 = vrot.slane %v174, 1
    %v176 = vadd.f32 %v174, %v175
    %s177 = vtos %v176
    %182 = vrot.lane.b32.xlu0 %v56, 64
    %v183 = vpop.permute.xlu0 %182
    %184 = vrot.lane.b32.xlu0 %v57, 64
    %v185 = vpop.permute.xlu0 %184
    %186 = vrot.lane.b32.xlu0 %v58, 64
    %v187 = vpop.permute.xlu0 %186
    %188 = vrot.lane.b32.xlu0 %v59, 64
    %v189 = vpop.permute.xlu0 %188
    %v194 = vsel %vm39, %v183, 0.0
    %v195 = vsel %vm39, %v185, 0.0
    %v196 = vadd.f32 %v194, %v195
    %v197 = vsel %vm39, %v187, 0.0
    %v198 = vadd.f32 %v196, %v197
    %v199 = vsel %vm39, %v189, 0.0
    %v200 = vadd.f32 %v198, %v199
    %201 = vadd.xlane.f32.xlu0 %v200
    %v202 = vpop.xlane.xlu0 %201
    %v203 = vrot.slane %v202, 4
    %v204 = vadd.f32 %v202, %v203
    %v205 = vrot.slane %v204, 2
    %v206 = vadd.f32 %v204, %v205
    %v207 = vrot.slane %v206, 1
    %v208 = vadd.f32 %v206, %v207
    %s209 = vtos %v208
    %s210 = smul.f32 %s177, 0.00048828125
    %s211 = smul.f32 %s209, 0.00048828125
    %s212 = smul.f32 %s210, %s210
    %s213 = ssub.f32 %s211, %s212
    %s214 = sadd.f32 %s213, 1e-05
    %v215 = vstv %s214
    %v216 = vrsqrt.pop %v215
    %s217 = vtos %v216
    %v218 = vstv %s210
    %v219 = vsub.f32 %v27, %v218
    %v220 = vsub.f32 %v28, %v218
    %v221 = vsub.f32 %v29, %v218
    %v222 = vsub.f32 %v30, %v218
    %v223 = vstv %s217
    %v224 = vmul.f32 %v219, %v223
    %v225 = vmul.f32 %v220, %v223
    %v226 = vmul.f32 %v221, %v223
    %v227 = vmul.f32 %v222, %v223
    %v228 = vmul.f32 %v224, %v97
    %v229 = vmul.f32 %v225, %v102
    %v230 = vmul.f32 %v226, %v107
    %v231 = vmul.f32 %v227, %v112
    %v232 = vadd.f32 %v228, %v121
    %v233 = vadd.f32 %v229, %v126
    %v234 = vadd.f32 %v230, %v131
    %v235 = vadd.f32 %v231, %v136
    %vm236 = vcmask 1048064
    %237 = vst.msk [vmem:[#allocation2] sm:$0xff] %vm236, %v232
    %238 = vst.msk [vmem:[#allocation2 + $0x8] sm:$0xff] %vm236, %v233
    %239 = vst.msk [vmem:[#allocation2 + $0x10] sm:$0xff] %vm236, %v234
    %240 = vst.msk [vmem:[#allocation2 + $0x18] sm:$0xff] %vm236, %v235
    %v241 = vld [vmem:[#allocation2] sm:$0xff]
    %v242 = vld [vmem:[#allocation2 + $0x8] sm:$0xff]
    %v243 = vld [vmem:[#allocation2 + $0x10] sm:$0xff]
    %v244 = vld [vmem:[#allocation2 + $0x18] sm:$0xff]
    %v245 = vld [vmem:[%s3] sm:$0xff]
    %v246 = vld [vmem:[%s3 + $0x8] sm:$0xff]
    %v247 = vld [vmem:[%s3 + $0x10] sm:$0xff]
    %v248 = vld [vmem:[%s3 + $0x18] sm:$0xff]
    %v249 = vld [vmem:[%s3 + $0x20] sm:$0xff]
    %v250 = vld [vmem:[%s3 + $0x28] sm:$0xff]
    %v251 = vld [vmem:[%s3 + $0x30] sm:$0xff]
    %v252 = vld [vmem:[%s3 + $0x38] sm:$0xff]
    %v253 = vld [vmem:[%s3 + $0x40] sm:$0xff]
    %v254 = vld [vmem:[%s3 + $0x48] sm:$0xff]
    %v255 = vld [vmem:[%s3 + $0x50] sm:$0xff]
    %v256 = vld [vmem:[%s3 + $0x58] sm:$0xff]
    %v257 = vld [vmem:[%s4] sm:$0xff]
    %v258 = vld [vmem:[%s4 + $0x8] sm:$0xff]
    %v259 = vld [vmem:[%s4 + $0x10] sm:$0xff]
    %v260 = vld [vmem:[%s4 + $0x18] sm:$0xff]
    %v261 = vld [vmem:[%s4 + $0x20] sm:$0xff]
    %v262 = vld [vmem:[%s4 + $0x28] sm:$0xff]
    %v263 = vld [vmem:[%s4 + $0x30] sm:$0xff]
    %v264 = vld [vmem:[%s4 + $0x38] sm:$0xff]
    %v265 = vld [vmem:[%s4 + $0x40] sm:$0xff]
    %v266 = vld [vmem:[%s4 + $0x48] sm:$0xff]
    %v267 = vld [vmem:[%s4 + $0x50] sm:$0xff]
    %v268 = vld [vmem:[%s4 + $0x58] sm:$0xff]
    %270 = vset.pattern.permute.xlu0 0
    %271 = vperm.xlu0 %270, %v257
    %v272 = vpop.permute.xlu0 %271
    %275 = vset.pattern.permute.xlu0 0
    %276 = vperm.xlu0 %275, %v258
    %v277 = vpop.permute.xlu0 %276
    %280 = vset.pattern.permute.xlu0 0
    %281 = vperm.xlu0 %280, %v259
    %v282 = vpop.permute.xlu0 %281
    %285 = vset.pattern.permute.xlu0 0
    %286 = vperm.xlu0 %285, %v260
    %v287 = vpop.permute.xlu0 %286
    %290 = vset.pattern.permute.xlu0 0
    %291 = vperm.xlu0 %290, %v261
    %v292 = vpop.permute.xlu0 %291
    %295 = vset.pattern.permute.xlu0 0
    %296 = vperm.xlu0 %295, %v262
    %v297 = vpop.permute.xlu0 %296
    %300 = vset.pattern.permute.xlu0 0
    %301 = vperm.xlu0 %300, %v263
    %v302 = vpop.permute.xlu0 %301
    %305 = vset.pattern.permute.xlu0 0
    %306 = vperm.xlu0 %305, %v264
    %v307 = vpop.permute.xlu0 %306
    %310 = vset.pattern.permute.xlu0 0
    %311 = vperm.xlu0 %310, %v265
    %v312 = vpop.permute.xlu0 %311
    %315 = vset.pattern.permute.xlu0 0
    %316 = vperm.xlu0 %315, %v266
    %v317 = vpop.permute.xlu0 %316
    %320 = vset.pattern.permute.xlu0 0
    %321 = vperm.xlu0 %320, %v267
    %v322 = vpop.permute.xlu0 %321
    %325 = vset.pattern.permute.xlu0 0
    %326 = vperm.xlu0 %325, %v268
    %v327 = vpop.permute.xlu0 %326
    %vm329 = vcmask 261120
    %v331 = vsel %vm329, %v245, 0
    %v334 = vsel %vm329, %v246, 0
    %v337 = vsel %vm329, %v247, 0
    %v340 = vsel %vm329, %v248, 0
    %v343 = vsel %vm329, %v249, 0
    %v346 = vsel %vm329, %v250, 0
    %v349 = vsel %vm329, %v251, 0
    %v352 = vsel %vm329, %v252, 0
    %v355 = vsel %vm329, %v253, 0
    %v358 = vsel %vm329, %v254, 0
    %v361 = vsel %vm329, %v255, 0
    %v364 = vsel %vm329, %v256, 0
    %366 = vmatprep.subr.mxu0 0.0
    %367 = vmatpush1.msra.mxu0 %v241
    %368 = vmatprep.subr.mxu0 0.0
    %369 = vmatpush1.msra.mxu0 %v242
    %370 = vmatprep.subr.mxu0 0.0
    %371 = vmatpush1.msra.mxu0 %v243
    %372 = vmatprep.subr.mxu0 0.0
    %373 = vmatpush1.msra.mxu0 %v244
    %374 = vmatprep.subr.mxu0 0.0
    %375 = vmatpush1.msra.mxu0 0.0
    %376 = vmatprep.subr.mxu0 0.0
    %377 = vmatpush1.msra.mxu0 0.0
    %378 = vmatprep.subr.mxu0 0.0
    %379 = vmatpush1.msra.mxu0 0.0
    %380 = vmatprep.subr.mxu0 0.0
    %381 = vmatpush1.msra.mxu0 0.0
    %382 = vmatprep.subr.mxu0 0.0
    %383 = vmatpush1.msra.mxu0 0.0
    %384 = vmatprep.subr.mxu0 0.0
    %385 = vmatpush1.msra.mxu0 0.0
    %386 = vmatprep.subr.mxu0 0.0
    %387 = vmatpush1.msra.mxu0 0.0
    %388 = vmatprep.subr.mxu0 0.0
    %389 = vmatpush1.msra.mxu0 0.0
    %390 = vmatprep.subr.mxu0 0.0
    %391 = vmatpush1.msra.mxu0 0.0
    %392 = vmatprep.subr.mxu0 0.0
    %393 = vmatpush1.msra.mxu0 0.0
    %394 = vmatprep.subr.mxu0 0.0
    %395 = vmatpush1.msra.mxu0 0.0
    %396 = vmatprep.subr.mxu0 0.0
    %397 = vmatpush1.msra.mxu0 0.0
    %398 = vmatprep.subr.mxu0 0.0
    %399 = vmatpush1.msra.mxu0 0.0
    %400 = vmatprep.subr.mxu0 0.0
    %401 = vmatpush1.msra.mxu0 0.0
    %402 = vmatprep.subr.mxu0 0.0
    %403 = vmatpush1.msra.mxu0 0.0
    %404 = vmatprep.subr.mxu0 0.0
    %405 = vmatpush1.msra.mxu0 0.0
    %406 = vmatprep.subr.mxu0 0.0
    %407 = vmatpush1.msra.mxu0 0.0
    %408 = vmatprep.subr.mxu0 0.0
    %409 = vmatpush1.msra.mxu0 0.0
    %410 = vmatprep.subr.mxu0 0.0
    %411 = vmatpush1.msra.mxu0 0.0
    %412 = vmatprep.subr.mxu0 0.0
    %413 = vmatpush1.msra.mxu0 0.0
    %414 = vmatprep.subr.mxu0 0.0
    %415 = vmatpush1.msra.mxu0 0.0
    %416 = vmatprep.subr.mxu0 0.0
    %417 = vmatpush1.msra.mxu0 0.0
    %418 = vmatprep.subr.mxu0 0.0
    %419 = vmatpush1.msra.mxu0 0.0
    %420 = vmatprep.subr.mxu0 0.0
    %421 = vmatpush1.msra.mxu0 0.0
    %422 = vmatprep.subr.mxu0 0.0
    %423 = vmatpush1.msra.mxu0 0.0
    %424 = vmatprep.subr.mxu0 0.0
    %425 = vmatpush1.msra.mxu0 0.0
    %426 = vmatprep.subr.mxu0 0.0
    %427 = vmatpush1.msra.mxu0 0.0
    %428 = vmatprep.subr.mxu0 0.0
    %429 = vmatpush1.msra.mxu0 0.0
    %430 = vmatprep.mubr.f32.mxu0 0.0
    %431 = vmatmul.mubr.f32.gmra.mrb[0].mxu0 %v331
    %v432 = vpop.f32.mrb[0].mxu0
    %v433 = vadd.f32 %v272, %v432
    %v434 = vpop.f32.mrb[0].mxu0
    %435 = vmatprep.mubr.f32.mxu0 0.0
    %436 = vmatmul.mubr.f32.gmra.mrb[0].mxu0 %v334
    %v437 = vpop.f32.mrb[0].mxu0
    %v438 = vadd.f32 %v277, %v437
    %v439 = vpop.f32.mrb[0].mxu0
    %440 = vmatprep.mubr.f32.mxu0 0.0
    %441 = vmatmul.mubr.f32.gmra.mrb[0].mxu0 %v337
    %v442 = vpop.f32.mrb[0].mxu0
    %v443 = vadd.f32 %v282, %v442
    %v444 = vpop.f32.mrb[0].mxu0
    %445 = vmatprep.mubr.f32.mxu0 0.0
    %446 = vmatmul.mubr.f32.gmra.mrb[0].mxu0 %v340
    %v447 = vpop.f32.mrb[0].mxu0
    %v448 = vadd.f32 %v287, %v447
    %v449 = vpop.f32.mrb[0].mxu0
    %450 = vmatprep.mubr.f32.mxu0 0.0
    %451 = vmatmul.mubr.f32.gmra.mrb[0].mxu0 %v343
    %v452 = vpop.f32.mrb[0].mxu0
    %v453 = vadd.f32 %v292, %v452
    %v454 = vpop.f32.mrb[0].mxu0
    %455 = vmatprep.mubr.f32.mxu0 0.0
    %456 = vmatmul.mubr.f32.gmra.mrb[0].mxu0 %v346
    %v457 = vpop.f32.mrb[0].mxu0
    %v458 = vadd.f32 %v297, %v457
    %v459 = vpop.f32.mrb[0].mxu0
    %460 = vmatprep.mubr.f32.mxu0 0.0
    %461 = vmatmul.mubr.f32.gmra.mrb[0].mxu0 %v349
    %v462 = vpop.f32.mrb[0].mxu0
    %v463 = vadd.f32 %v302, %v462
    %v464 = vpop.f32.mrb[0].mxu0
    %465 = vmatprep.mubr.f32.mxu0 0.0
    %466 = vmatmul.mubr.f32.gmra.mrb[0].mxu0 %v352
    %v467 = vpop.f32.mrb[0].mxu0
    %v468 = vadd.f32 %v307, %v467
    %v469 = vpop.f32.mrb[0].mxu0
    %470 = vmatprep.mubr.f32.mxu0 0.0
    %471 = vmatmul.mubr.f32.gmra.mrb[0].mxu0 %v355
    %v472 = vpop.f32.mrb[0].mxu0
    %v473 = vadd.f32 %v312, %v472
    %v474 = vpop.f32.mrb[0].mxu0
    %475 = vmatprep.mubr.f32.mxu0 0.0
    %476 = vmatmul.mubr.f32.gmra.mrb[0].mxu0 %v358
    %v477 = vpop.f32.mrb[0].mxu0
    %v478 = vadd.f32 %v317, %v477
    %v479 = vpop.f32.mrb[0].mxu0
    %480 = vmatprep.mubr.f32.mxu0 0.0
    %481 = vmatmul.mubr.f32.gmra.mrb[0].mxu0 %v361
    %v482 = vpop.f32.mrb[0].mxu0
    %v483 = vadd.f32 %v322, %v482
    %v484 = vpop.f32.mrb[0].mxu0
    %485 = vmatprep.mubr.f32.mxu0 0.0
    %486 = vmatmul.mubr.f32.gmra.mrb[0].mxu0 %v364
    %v487 = vpop.f32.mrb[0].mxu0
    %v488 = vadd.f32 %v327, %v487
    %v489 = vpop.f32.mrb[0].mxu0
    %490 = vdwg.mxu0
    %491 = vxpose.xlu0.b32.start [1/16] %v453, 128
    %492 = vxpose.xlu0.b32.cont [2/16] %v458, 128
    %493 = vxpose.xlu0.b32.cont [3/16] %v463, 128
    %494 = vxpose.xlu0.b32.cont [4/16] %v468, 128
    %495 = vxpose.xlu0.b32.cont [5/16] 0.0, 128
    %496 = vxpose.xlu0.b32.cont [6/16] 0.0, 128
    %497 = vxpose.xlu0.b32.cont [7/16] 0.0, 128
    %498 = vxpose.xlu0.b32.cont [8/16] 0.0, 128
    %499 = vxpose.xlu0.b32.cont [9/16] 0.0, 128
    %500 = vxpose.xlu0.b32.cont [10/16] 0.0, 128
    %501 = vxpose.xlu0.b32.cont [11/16] 0.0, 128
    %502 = vxpose.xlu0.b32.cont [12/16] 0.0, 128
    %503 = vxpose.xlu0.b32.cont [13/16] 0.0, 128
    %504 = vxpose.xlu0.b32.cont [14/16] 0.0, 128
    %505 = vxpose.xlu0.b32.cont [15/16] 0.0, 128
    %506 = vxpose.xlu0.b32.end [16/16] 0.0, 128
    %v507 = vpop.trf.xlu0
    %v508 = vpop.trf.xlu0
    %v509 = vpop.trf.xlu0
    %v510 = vpop.trf.xlu0
    %v511 = vpop.trf.xlu0
    %v512 = vpop.trf.xlu0
    %v513 = vpop.trf.xlu0
    %v514 = vpop.trf.xlu0
    %v515 = vpop.trf.xlu0
    %v516 = vpop.trf.xlu0
    %v517 = vpop.trf.xlu0
    %v518 = vpop.trf.xlu0
    %v519 = vpop.trf.xlu0
    %v520 = vpop.trf.xlu0
    %v521 = vpop.trf.xlu0
    %v522 = vpop.trf.xlu0
    %v524 = vsel %vm329, %v507, 0
    %v527 = vsel %vm329, %v508, 0
    %v530 = vsel %vm329, %v509, 0
    %v533 = vsel %vm329, %v510, 0
    %v536 = vsel %vm329, %v511, 0
    %v539 = vsel %vm329, %v512, 0
    %v542 = vsel %vm329, %v513, 0
    %v545 = vsel %vm329, %v514, 0
    %547 = vmatprep.subr.mxu0 0.0
    %548 = vmatpush1.msra.mxu0 %v433
    %549 = vmatprep.subr.mxu0 0.0
    %550 = vmatpush1.msra.mxu0 %v438
    %551 = vmatprep.subr.mxu0 0.0
    %552 = vmatpush1.msra.mxu0 %v443
    %553 = vmatprep.subr.mxu0 0.0
    %554 = vmatpush1.msra.mxu0 %v448
    %555 = vmatprep.subr.mxu0 0.0
    %556 = vmatpush1.msra.mxu0 0.0
    %557 = vmatprep.subr.mxu0 0.0
    %558 = vmatpush1.msra.mxu0 0.0
    %559 = vmatprep.subr.mxu0 0.0
    %560 = vmatpush1.msra.mxu0 0.0
    %561 = vmatprep.subr.mxu0 0.0
    %562 = vmatpush1.msra.mxu0 0.0
    %563 = vmatprep.subr.mxu0 0.0
    %564 = vmatpush1.msra.mxu0 0.0
    %565 = vmatprep.subr.mxu0 0.0
    %566 = vmatpush1.msra.mxu0 0.0
    %567 = vmatprep.subr.mxu0 0.0
    %568 = vmatpush1.msra.mxu0 0.0
    %569 = vmatprep.subr.mxu0 0.0
    %570 = vmatpush1.msra.mxu0 0.0
    %571 = vmatprep.subr.mxu0 0.0
    %572 = vmatpush1.msra.mxu0 0.0
    %573 = vmatprep.subr.mxu0 0.0
    %574 = vmatpush1.msra.mxu0 0.0
    %575 = vmatprep.subr.mxu0 0.0
    %576 = vmatpush1.msra.mxu0 0.0
    %577 = vmatprep.subr.mxu0 0.0
    %578 = vmatpush1.msra.mxu0 0.0
    %579 = vmatprep.subr.mxu0 0.0
    %580 = vmatpush1.msra.mxu0 0.0
    %581 = vmatprep.subr.mxu0 0.0
    %582 = vmatpush1.msra.mxu0 0.0
    %583 = vmatprep.subr.mxu0 0.0
    %584 = vmatpush1.msra.mxu0 0.0
    %585 = vmatprep.subr.mxu0 0.0
    %586 = vmatpush1.msra.mxu0 0.0
    %587 = vmatprep.subr.mxu0 0.0
    %588 = vmatpush1.msra.mxu0 0.0
    %589 = vmatprep.subr.mxu0 0.0
    %590 = vmatpush1.msra.mxu0 0.0
    %591 = vmatprep.subr.mxu0 0.0
    %592 = vmatpush1.msra.mxu0 0.0
    %593 = vmatprep.subr.mxu0 0.0
    %594 = vmatpush1.msra.mxu0 0.0
    %595 = vmatprep.subr.mxu0 0.0
    %596 = vmatpush1.msra.mxu0 0.0
    %597 = vmatprep.subr.mxu0 0.0
    %598 = vmatpush1.msra.mxu0 0.0
    %599 = vmatprep.subr.mxu0 0.0
    %600 = vmatpush1.msra.mxu0 0.0
    %601 = vmatprep.subr.mxu0 0.0
    %602 = vmatpush1.msra.mxu0 0.0
    %603 = vmatprep.subr.mxu0 0.0
    %604 = vmatpush1.msra.mxu0 0.0
    %605 = vmatprep.subr.mxu0 0.0
    %606 = vmatpush1.msra.mxu0 0.0
    %607 = vmatprep.subr.mxu0 0.0
    %608 = vmatpush1.msra.mxu0 0.0
    %609 = vmatprep.subr.mxu0 0.0
    %610 = vmatpush1.msra.mxu0 0.0
    %611 = vmatprep.mubr.f32.mxu0 0.0
    %612 = vmatmul.mubr.f32.gmra.mrb[0].mxu0 %v524
    %v613 = vpop.f32.mrb[0].mxu0
    %v614 = vadd.f32 0.0, %v613
    %v615 = vpop.f32.mrb[0].mxu0
    %616 = vmatprep.mubr.f32.mxu0 0.0
    %617 = vmatmul.mubr.f32.gmra.mrb[0].mxu0 %v527
    %v618 = vpop.f32.mrb[0].mxu0
    %v619 = vadd.f32 0.0, %v618
    %v620 = vpop.f32.mrb[0].mxu0
    %621 = vmatprep.mubr.f32.mxu0 0.0
    %622 = vmatmul.mubr.f32.gmra.mrb[0].mxu0 %v530
    %v623 = vpop.f32.mrb[0].mxu0
    %v624 = vadd.f32 0.0, %v623
    %v625 = vpop.f32.mrb[0].mxu0
    %626 = vmatprep.mubr.f32.mxu0 0.0
    %627 = vmatmul.mubr.f32.gmra.mrb[0].mxu0 %v533
    %v628 = vpop.f32.mrb[0].mxu0
    %v629 = vadd.f32 0.0, %v628
    %v630 = vpop.f32.mrb[0].mxu0
    %631 = vmatprep.mubr.f32.mxu0 0.0
    %632 = vmatmul.mubr.f32.gmra.mrb[0].mxu0 %v536
    %v633 = vpop.f32.mrb[0].mxu0
    %v634 = vadd.f32 0.0, %v633
    %v635 = vpop.f32.mrb[0].mxu0
    %636 = vmatprep.mubr.f32.mxu0 0.0
    %637 = vmatmul.mubr.f32.gmra.mrb[0].mxu0 %v539
    %v638 = vpop.f32.mrb[0].mxu0
    %v639 = vadd.f32 0.0, %v638
    %v640 = vpop.f32.mrb[0].mxu0
    %641 = vmatprep.mubr.f32.mxu0 0.0
    %642 = vmatmul.mubr.f32.gmra.mrb[0].mxu0 %v542
    %v643 = vpop.f32.mrb[0].mxu0
    %v644 = vadd.f32 0.0, %v643
    %v645 = vpop.f32.mrb[0].mxu0
    %646 = vmatprep.mubr.f32.mxu0 0.0
    %647 = vmatmul.mubr.f32.gmra.mrb[0].mxu0 %v545
    %v648 = vpop.f32.mrb[0].mxu0
    %v649 = vadd.f32 0.0, %v648
    %v650 = vpop.f32.mrb[0].mxu0
    %651 = vdwg.mxu0
    %v652 = vsel %vm39, %v614, -inf
    %v653 = vsel %vm39, %v619, -inf
    %v654 = vsel %vm39, %v624, -inf
    %v655 = vsel %vm39, %v629, -inf
    %v656 = vsel %vm39, %v634, -inf
    %v657 = vmax.f32 %v652, %v656
    %v658 = vsel %vm39, %v639, -inf
    %v659 = vmax.f32 %v653, %v658
    %v660 = vsel %vm39, %v644, -inf
    %v661 = vmax.f32 %v654, %v660
    %v662 = vsel %vm39, %v649, -inf
    %v663 = vmax.f32 %v655, %v662
    %v664 = vmax.f32 %v657, %v659
    %v665 = vmax.f32 %v661, %v663
    %v666 = vmax.f32 %v664, %v665
    %v667 = vrot.slane %v666, 4
    %v668 = vmax.f32 %v666, %v667
    %v669 = vrot.slane %v668, 2
    %v670 = vmax.f32 %v668, %v669
    %v671 = vrot.slane %v670, 1
    %v672 = vmax.f32 %v670, %v671
    %v673 = vsub.f32 %v614, %v672
    %v674 = vsub.f32 %v619, %v672
    %v675 = vsub.f32 %v624, %v672
    %v676 = vsub.f32 %v629, %v672
    %v677 = vsub.f32 %v634, %v672
    %v678 = vsub.f32 %v639, %v672
    %v679 = vsub.f32 %v644, %v672
    %v680 = vsub.f32 %v649, %v672
    %v681 = vmul.f32 %v673, 1.442695
    %v682 = vpow.pop %v681
    %v683 = vmul.f32 %v674, 1.442695
    %v684 = vpow.pop %v683
    %v685 = vmul.f32 %v675, 1.442695
    %v686 = vpow.pop %v685
    %v687 = vmul.f32 %v676, 1.442695
    %v688 = vpow.pop %v687
    %v689 = vmul.f32 %v677, 1.442695
    %v690 = vpow.pop %v689
    %v691 = vmul.f32 %v678, 1.442695
    %v692 = vpow.pop %v691
    %v693 = vmul.f32 %v679, 1.442695
    %v694 = vpow.pop %v693
    %v695 = vmul.f32 %v680, 1.442695
    %v696 = vpow.pop %v695
    %v697 = vsel %vm39, %v682, 0.0
    %v698 = vsel %vm39, %v684, 0.0
    %v699 = vadd.f32 %v697, %v698
    %v700 = vsel %vm39, %v686, 0.0
    %v701 = vadd.f32 %v699, %v700
    %v702 = vsel %vm39, %v688, 0.0
    %v703 = vadd.f32 %v701, %v702
    %v704 = vsel %vm39, %v690, 0.0
    %v705 = vadd.f32 %v703, %v704
    %v706 = vsel %vm39, %v692, 0.0
    %v707 = vadd.f32 %v705, %v706
    %v708 = vsel %vm39, %v694, 0.0
    %v709 = vadd.f32 %v707, %v708
    %v710 = vsel %vm39, %v696, 0.0
    %v711 = vadd.f32 %v709, %v710
    %v712 = vrot.slane %v711, 4
    %v713 = vadd.f32 %v711, %v712
    %v714 = vrot.slane %v713, 2
    %v715 = vadd.f32 %v713, %v714
    %v716 = vrot.slane %v715, 1
    %v717 = vadd.f32 %v715, %v716
    %v719 = vsel %vm39, %v473, 0
    %v722 = vsel %vm39, %v478, 0
    %v725 = vsel %vm39, %v483, 0
    %v728 = vsel %vm39, %v488, 0
    %730 = vmatprep.subr.mxu0 0.0
    %731 = vmatpush1.msra.mxu0 %v682
    %732 = vmatprep.subr.mxu0 0.0
    %733 = vmatpush1.msra.mxu0 %v684
    %734 = vmatprep.subr.mxu0 0.0
    %735 = vmatpush1.msra.mxu0 %v686
    %736 = vmatprep.subr.mxu0 0.0
    %737 = vmatpush1.msra.mxu0 %v688
    %738 = vmatprep.subr.mxu0 0.0
    %739 = vmatpush1.msra.mxu0 %v690
    %740 = vmatprep.subr.mxu0 0.0
    %741 = vmatpush1.msra.mxu0 %v692
    %742 = vmatprep.subr.mxu0 0.0
    %743 = vmatpush1.msra.mxu0 %v694
    %744 = vmatprep.subr.mxu0 0.0
    %745 = vmatpush1.msra.mxu0 %v696
    %746 = vmatprep.subr.mxu0 0.0
    %747 = vmatpush1.msra.mxu0 0.0
    %748 = vmatprep.subr.mxu0 0.0
    %749 = vmatpush1.msra.mxu0 0.0
    %750 = vmatprep.subr.mxu0 0.0
    %751 = vmatpush1.msra.mxu0 0.0
    %752 = vmatprep.subr.mxu0 0.0
    %753 = vmatpush1.msra.mxu0 0.0
    %754 = vmatprep.subr.mxu0 0.0
    %755 = vmatpush1.msra.mxu0 0.0
    %756 = vmatprep.subr.mxu0 0.0
    %757 = vmatpush1.msra.mxu0 0.0
    %758 = vmatprep.subr.mxu0 0.0
    %759 = vmatpush1.msra.mxu0 0.0
    %760 = vmatprep.subr.mxu0 0.0
    %761 = vmatpush1.msra.mxu0 0.0
    %762 = vmatprep.subr.mxu0 0.0
    %763 = vmatpush1.msra.mxu0 0.0
    %764 = vmatprep.subr.mxu0 0.0
    %765 = vmatpush1.msra.mxu0 0.0
    %766 = vmatprep.subr.mxu0 0.0
    %767 = vmatpush1.msra.mxu0 0.0
    %768 = vmatprep.subr.mxu0 0.0
    %769 = vmatpush1.msra.mxu0 0.0
    %770 = vmatprep.subr.mxu0 0.0
    %771 = vmatpush1.msra.mxu0 0.0
    %772 = vmatprep.subr.mxu0 0.0
    %773 = vmatpush1.msra.mxu0 0.0
    %774 = vmatprep.subr.mxu0 0.0
    %775 = vmatpush1.msra.mxu0 0.0
    %776 = vmatprep.subr.mxu0 0.0
    %777 = vmatpush1.msra.mxu0 0.0
    %778 = vmatprep.subr.mxu0 0.0
    %779 = vmatpush1.msra.mxu0 0.0
    %780 = vmatprep.subr.mxu0 0.0
    %781 = vmatpush1.msra.mxu0 0.0
    %782 = vmatprep.subr.mxu0 0.0
    %783 = vmatpush1.msra.mxu0 0.0
    %784 = vmatprep.subr.mxu0 0.0
    %785 = vmatpush1.msra.mxu0 0.0
    %786 = vmatprep.subr.mxu0 0.0
    %787 = vmatpush1.msra.mxu0 0.0
    %788 = vmatprep.subr.mxu0 0.0
    %789 = vmatpush1.msra.mxu0 0.0
    %790 = vmatprep.subr.mxu0 0.0
    %791 = vmatpush1.msra.mxu0 0.0
    %792 = vmatprep.subr.mxu0 0.0
    %793 = vmatpush1.msra.mxu0 0.0
    %794 = vmatprep.mubr.f32.mxu0 0.0
    %795 = vmatmul.mubr.f32.gmra.mrb[0].mxu0 %v719
    %v796 = vpop.f32.mrb[0].mxu0
    %v797 = vadd.f32 0.0, %v796
    %v798 = vpop.f32.mrb[0].mxu0
    %799 = vmatprep.mubr.f32.mxu0 0.0
    %800 = vmatmul.mubr.f32.gmra.mrb[0].mxu0 %v722
    %v801 = vpop.f32.mrb[0].mxu0
    %v802 = vadd.f32 0.0, %v801
    %v803 = vpop.f32.mrb[0].mxu0
    %804 = vmatprep.mubr.f32.mxu0 0.0
    %805 = vmatmul.mubr.f32.gmra.mrb[0].mxu0 %v725
    %v806 = vpop.f32.mrb[0].mxu0
    %v807 = vadd.f32 0.0, %v806
    %v808 = vpop.f32.mrb[0].mxu0
    %809 = vmatprep.mubr.f32.mxu0 0.0
    %810 = vmatmul.mubr.f32.gmra.mrb[0].mxu0 %v728
    %v811 = vpop.f32.mrb[0].mxu0
    %v812 = vadd.f32 0.0, %v811
    %v813 = vpop.f32.mrb[0].mxu0
    %814 = vdwg.mxu0
    %v815 = vrcp.pop %v717
    %v816 = vmul.f32 %v717, %v815
    %v817 = vsub.f32 2.0, %v816
    %v818 = vmul.f32 %v815, %v817
    %v819 = vmul.f32 %v797, %v818
    %v820 = vmul.f32 %v802, %v818
    %v821 = vmul.f32 %v807, %v818
    %v822 = vmul.f32 %v812, %v818
    %823 = vst.msk [vmem:[#allocation3] sm:$0xff] %vm39, %v819
    %824 = vst.msk [vmem:[#allocation3 + $0x8] sm:$0xff] %vm39, %v820
    %825 = vst.msk [vmem:[#allocation3 + $0x10] sm:$0xff] %vm39, %v821
    %826 = vst.msk [vmem:[#allocation3 + $0x18] sm:$0xff] %vm39, %v822
    %831 = vrot.lane.b32.xlu0 %v453, 64
    %v832 = vpop.permute.xlu0 %831
    %833 = vrot.lane.b32.xlu0 %v458, 64
    %v834 = vpop.permute.xlu0 %833
    %835 = vrot.lane.b32.xlu0 %v463, 64
    %v836 = vpop.permute.xlu0 %835
    %837 = vrot.lane.b32.xlu0 %v468, 64
    %v838 = vpop.permute.xlu0 %837
    %843 = vxpose.xlu0.b32.start [1/16] %v832, 128
    %844 = vxpose.xlu0.b32.cont [2/16] %v834, 128
    %845 = vxpose.xlu0.b32.cont [3/16] %v836, 128
    %846 = vxpose.xlu0.b32.cont [4/16] %v838, 128
    %847 = vxpose.xlu0.b32.cont [5/16] 0.0, 128
    %848 = vxpose.xlu0.b32.cont [6/16] 0.0, 128
    %849 = vxpose.xlu0.b32.cont [7/16] 0.0, 128
    %850 = vxpose.xlu0.b32.cont [8/16] 0.0, 128
    %851 = vxpose.xlu0.b32.cont [9/16] 0.0, 128
    %852 = vxpose.xlu0.b32.cont [10/16] 0.0, 128
    %853 = vxpose.xlu0.b32.cont [11/16] 0.0, 128
    %854 = vxpose.xlu0.b32.cont [12/16] 0.0, 128
    %855 = vxpose.xlu0.b32.cont [13/16] 0.0, 128
    %856 = vxpose.xlu0.b32.cont [14/16] 0.0, 128
    %857 = vxpose.xlu0.b32.cont [15/16] 0.0, 128
    %858 = vxpose.xlu0.b32.end [16/16] 0.0, 128
    %v859 = vpop.trf.xlu0
    %v860 = vpop.trf.xlu0
    %v861 = vpop.trf.xlu0
    %v862 = vpop.trf.xlu0
    %v863 = vpop.trf.xlu0
    %v864 = vpop.trf.xlu0
    %v865 = vpop.trf.xlu0
    %v866 = vpop.trf.xlu0
    %v867 = vpop.trf.xlu0
    %v868 = vpop.trf.xlu0
    %v869 = vpop.trf.xlu0
    %v870 = vpop.trf.xlu0
    %v871 = vpop.trf.xlu0
    %v872 = vpop.trf.xlu0
    %v873 = vpop.trf.xlu0
    %v874 = vpop.trf.xlu0
    %879 = vrot.lane.b32.xlu0 %v433, 64
    %v880 = vpop.permute.xlu0 %879
    %881 = vrot.lane.b32.xlu0 %v438, 64
    %v882 = vpop.permute.xlu0 %881
    %883 = vrot.lane.b32.xlu0 %v443, 64
    %v884 = vpop.permute.xlu0 %883
    %885 = vrot.lane.b32.xlu0 %v448, 64
    %v886 = vpop.permute.xlu0 %885
    %v892 = vsel %vm329, %v859, 0
    %v895 = vsel %vm329, %v860, 0
    %v898 = vsel %vm329, %v861, 0
    %v901 = vsel %vm329, %v862, 0
    %v904 = vsel %vm329, %v863, 0
    %v907 = vsel %vm329, %v864, 0
    %v910 = vsel %vm329, %v865, 0
    %v913 = vsel %vm329, %v866, 0
    %915 = vmatprep.subr.mxu0 0.0
    %916 = vmatpush1.msra.mxu0 %v880
    %917 = vmatprep.subr.mxu0 0.0
    %918 = vmatpush1.msra.mxu0 %v882
    %919 = vmatprep.subr.mxu0 0.0
    %920 = vmatpush1.msra.mxu0 %v884
    %921 = vmatprep.subr.mxu0 0.0
    %922 = vmatpush1.msra.mxu0 %v886
    %923 = vmatprep.subr.mxu0 0.0
    %924 = vmatpush1.msra.mxu0 0.0
    %925 = vmatprep.subr.mxu0 0.0
    %926 = vmatpush1.msra.mxu0 0.0
    %927 = vmatprep.subr.mxu0 0.0
    %928 = vmatpush1.msra.mxu0 0.0
    %929 = vmatprep.subr.mxu0 0.0
    %930 = vmatpush1.msra.mxu0 0.0
    %931 = vmatprep.subr.mxu0 0.0
    %932 = vmatpush1.msra.mxu0 0.0
    %933 = vmatprep.subr.mxu0 0.0
    %934 = vmatpush1.msra.mxu0 0.0
    %935 = vmatprep.subr.mxu0 0.0
    %936 = vmatpush1.msra.mxu0 0.0
    %937 = vmatprep.subr.mxu0 0.0
    %938 = vmatpush1.msra.mxu0 0.0
    %939 = vmatprep.subr.mxu0 0.0
    %940 = vmatpush1.msra.mxu0 0.0
    %941 = vmatprep.subr.mxu0 0.0
    %942 = vmatpush1.msra.mxu0 0.0
    %943 = vmatprep.subr.mxu0 0.0
    %944 = vmatpush1.msra.mxu0 0.0
    %945 = vmatprep.subr.mxu0 0.0
    %946 = vmatpush1.msra.mxu0 0.0
    %947 = vmatprep.subr.mxu0 0.0
    %948 = vmatpush1.msra.mxu0 0.0
    %949 = vmatprep.subr.mxu0 0.0
    %950 = vmatpush1.msra.mxu0 0.0
    %951 = vmatprep.subr.mxu0 0.0
    %952 = vmatpush1.msra.mxu0 0.0
    %953 = vmatprep.subr.mxu0 0.0
    %954 = vmatpush1.msra.mxu0 0.0
    %955 = vmatprep.subr.mxu0 0.0
    %956 = vmatpush1.msra.mxu0 0.0
    %957 = vmatprep.subr.mxu0 0.0
    %958 = vmatpush1.msra.mxu0 0.0
    %959 = vmatprep.subr.mxu0 0.0
    %960 = vmatpush1.msra.mxu0 0.0
    %961 = vmatprep.subr.mxu0 0.0
    %962 = vmatpush1.msra.mxu0 0.0
    %963 = vmatprep.subr.mxu0 0.0
    %964 = vmatpush1.msra.mxu0 0.0
    %965 = vmatprep.subr.mxu0 0.0
    %966 = vmatpush1.msra.mxu0 0.0
    %967 = vmatprep.subr.mxu0 0.0
    %968 = vmatpush1.msra.mxu0 0.0
    %969 = vmatprep.subr.mxu0 0.0
    %970 = vmatpush1.msra.mxu0 0.0
    %971 = vmatprep.subr.mxu0 0.0
    %972 = vmatpush1.msra.mxu0 0.0
    %973 = vmatprep.subr.mxu0 0.0
    %974 = vmatpush1.msra.mxu0 0.0
    %975 = vmatprep.subr.mxu0 0.0
    %976 = vmatpush1.msra.mxu0 0.0
    %977 = vmatprep.subr.mxu0 0.0
    %978 = vmatpush1.msra.mxu0 0.0
    %979 = vmatprep.mubr.f32.mxu0 0.0
    %980 = vmatmul.mubr.f32.gmra.mrb[0].mxu0 %v892
    %v981 = vpop.f32.mrb[0].mxu0
    %v982 = vadd.f32 0.0, %v981
    %v983 = vpop.f32.mrb[0].mxu0
    %984 = vmatprep.mubr.f32.mxu0 0.0
    %985 = vmatmul.mubr.f32.gmra.mrb[0].mxu0 %v895
    %v986 = vpop.f32.mrb[0].mxu0
    %v987 = vadd.f32 0.0, %v986
    %v988 = vpop.f32.mrb[0].mxu0
    %989 = vmatprep.mubr.f32.mxu0 0.0
    %990 = vmatmul.mubr.f32.gmra.mrb[0].mxu0 %v898
    %v991 = vpop.f32.mrb[0].mxu0
    %v992 = vadd.f32 0.0, %v991
    %v993 = vpop.f32.mrb[0].mxu0
    %994 = vmatprep.mubr.f32.mxu0 0.0
    %995 = vmatmul.mubr.f32.gmra.mrb[0].mxu0 %v901
    %v996 = vpop.f32.mrb[0].mxu0
    %v997 = vadd.f32 0.0, %v996
    %v998 = vpop.f32.mrb[0].mxu0
    %999 = vmatprep.mubr.f32.mxu0 0.0
    %1000 = vmatmul.mubr.f32.gmra.mrb[0].mxu0 %v904
    %v1001 = vpop.f32.mrb[0].mxu0
    %v1002 = vadd.f32 0.0, %v1001
    %v1003 = vpop.f32.mrb[0].mxu0
    %1004 = vmatprep.mubr.f32.mxu0 0.0
    %1005 = vmatmul.mubr.f32.gmra.mrb[0].mxu0 %v907
    %v1006 = vpop.f32.mrb[0].mxu0
    %v1007 = vadd.f32 0.0, %v1006
    %v1008 = vpop.f32.mrb[0].mxu0
    %1009 = vmatprep.mubr.f32.mxu0 0.0
    %1010 = vmatmul.mubr.f32.gmra.mrb[0].mxu0 %v910
    %v1011 = vpop.f32.mrb[0].mxu0
    %v1012 = vadd.f32 0.0, %v1011
    %v1013 = vpop.f32.mrb[0].mxu0
    %1014 = vmatprep.mubr.f32.mxu0 0.0
    %1015 = vmatmul.mubr.f32.gmra.mrb[0].mxu0 %v913
    %v1016 = vpop.f32.mrb[0].mxu0
    %v1017 = vadd.f32 0.0, %v1016
    %v1018 = vpop.f32.mrb[0].mxu0
    %1019 = vdwg.mxu0
    %v1020 = vsel %vm39, %v982, -inf
    %v1021 = vsel %vm39, %v987, -inf
    %v1022 = vsel %vm39, %v992, -inf
    %v1023 = vsel %vm39, %v997, -inf
    %v1024 = vsel %vm39, %v1002, -inf
    %v1025 = vmax.f32 %v1020, %v1024
    %v1026 = vsel %vm39, %v1007, -inf
    %v1027 = vmax.f32 %v1021, %v1026
    %v1028 = vsel %vm39, %v1012, -inf
    %v1029 = vmax.f32 %v1022, %v1028
    %v1030 = vsel %vm39, %v1017, -inf
    %v1031 = vmax.f32 %v1023, %v1030
    %v1032 = vmax.f32 %v1025, %v1027
    %v1033 = vmax.f32 %v1029, %v1031
    %v1034 = vmax.f32 %v1032, %v1033
    %v1035 = vrot.slane %v1034, 4
    %v1036 = vmax.f32 %v1034, %v1035
    %v1037 = vrot.slane %v1036, 2
    %v1038 = vmax.f32 %v1036, %v1037
    %v1039 = vrot.slane %v1038, 1
    %v1040 = vmax.f32 %v1038, %v1039
    %v1041 = vsub.f32 %v982, %v1040
    %v1042 = vsub.f32 %v987, %v1040
    %v1043 = vsub.f32 %v992, %v1040
    %v1044 = vsub.f32 %v997, %v1040
    %v1045 = vsub.f32 %v1002, %v1040
    %v1046 = vsub.f32 %v1007, %v1040
    %v1047 = vsub.f32 %v1012, %v1040
    %v1048 = vsub.f32 %v1017, %v1040
    %v1049 = vmul.f32 %v1041, 1.442695
    %v1050 = vpow.pop %v1049
    %v1051 = vmul.f32 %v1042, 1.442695
    %v1052 = vpow.pop %v1051
    %v1053 = vmul.f32 %v1043, 1.442695
    %v1054 = vpow.pop %v1053
    %v1055 = vmul.f32 %v1044, 1.442695
    %v1056 = vpow.pop %v1055
    %v1057 = vmul.f32 %v1045, 1.442695
    %v1058 = vpow.pop %v1057
    %v1059 = vmul.f32 %v1046, 1.442695
    %v1060 = vpow.pop %v1059
    %v1061 = vmul.f32 %v1047, 1.442695
    %v1062 = vpow.pop %v1061
    %v1063 = vmul.f32 %v1048, 1.442695
    %v1064 = vpow.pop %v1063
    %v1065 = vsel %vm39, %v1050, 0.0
    %v1066 = vsel %vm39, %v1052, 0.0
    %v1067 = vadd.f32 %v1065, %v1066
    %v1068 = vsel %vm39, %v1054, 0.0
    %v1069 = vadd.f32 %v1067, %v1068
    %v1070 = vsel %vm39, %v1056, 0.0
    %v1071 = vadd.f32 %v1069, %v1070
    %v1072 = vsel %vm39, %v1058, 0.0
    %v1073 = vadd.f32 %v1071, %v1072
    %v1074 = vsel %vm39, %v1060, 0.0
    %v1075 = vadd.f32 %v1073, %v1074
    %v1076 = vsel %vm39, %v1062, 0.0
    %v1077 = vadd.f32 %v1075, %v1076
    %v1078 = vsel %vm39, %v1064, 0.0
    %v1079 = vadd.f32 %v1077, %v1078
    %v1080 = vrot.slane %v1079, 4
    %v1081 = vadd.f32 %v1079, %v1080
    %v1082 = vrot.slane %v1081, 2
    %v1083 = vadd.f32 %v1081, %v1082
    %v1084 = vrot.slane %v1083, 1
    %v1085 = vadd.f32 %v1083, %v1084
    %1086 = vrot.lane.b32.xlu0 %v473, 64
    %v1087 = vpop.permute.xlu0 %1086
    %1088 = vrot.lane.b32.xlu0 %v478, 64
    %v1089 = vpop.permute.xlu0 %1088
    %1090 = vrot.lane.b32.xlu0 %v483, 64
    %v1091 = vpop.permute.xlu0 %1090
    %1092 = vrot.lane.b32.xlu0 %v488, 64
    %v1093 = vpop.permute.xlu0 %1092
    %v1094 = vsel %vm39, %v1087, 0
    %v1096 = vsel %vm39, %v1089, 0
    %v1098 = vsel %vm39, %v1091, 0
    %v1100 = vsel %vm39, %v1093, 0
    %1102 = vmatprep.subr.mxu0 0.0
    %1103 = vmatpush1.msra.mxu0 %v1050
    %1104 = vmatprep.subr.mxu0 0.0
    %1105 = vmatpush1.msra.mxu0 %v1052
    %1106 = vmatprep.subr.mxu0 0.0
    %1107 = vmatpush1.msra.mxu0 %v1054
    %1108 = vmatprep.subr.mxu0 0.0
    %1109 = vmatpush1.msra.mxu0 %v1056
    %1110 = vmatprep.subr.mxu0 0.0
    %1111 = vmatpush1.msra.mxu0 %v1058
    %1112 = vmatprep.subr.mxu0 0.0
    %1113 = vmatpush1.msra.mxu0 %v1060
    %1114 = vmatprep.subr.mxu0 0.0
    %1115 = vmatpush1.msra.mxu0 %v1062
    %1116 = vmatprep.subr.mxu0 0.0
    %1117 = vmatpush1.msra.mxu0 %v1064
    %1118 = vmatprep.subr.mxu0 0.0
    %1119 = vmatpush1.msra.mxu0 0.0
    %1120 = vmatprep.subr.mxu0 0.0
    %1121 = vmatpush1.msra.mxu0 0.0
    %1122 = vmatprep.subr.mxu0 0.0
    %1123 = vmatpush1.msra.mxu0 0.0
    %1124 = vmatprep.subr.mxu0 0.0
    %1125 = vmatpush1.msra.mxu0 0.0
    %1126 = vmatprep.subr.mxu0 0.0
    %1127 = vmatpush1.msra.mxu0 0.0
    %1128 = vmatprep.subr.mxu0 0.0
    %1129 = vmatpush1.msra.mxu0 0.0
    %1130 = vmatprep.subr.mxu0 0.0
    %1131 = vmatpush1.msra.mxu0 0.0
    %1132 = vmatprep.subr.mxu0 0.0
    %1133 = vmatpush1.msra.mxu0 0.0
    %1134 = vmatprep.subr.mxu0 0.0
    %1135 = vmatpush1.msra.mxu0 0.0
    %1136 = vmatprep.subr.mxu0 0.0
    %1137 = vmatpush1.msra.mxu0 0.0
    %1138 = vmatprep.subr.mxu0 0.0
    %1139 = vmatpush1.msra.mxu0 0.0
    %1140 = vmatprep.subr.mxu0 0.0
    %1141 = vmatpush1.msra.mxu0 0.0
    %1142 = vmatprep.subr.mxu0 0.0
    %1143 = vmatpush1.msra.mxu0 0.0
    %1144 = vmatprep.subr.mxu0 0.0
    %1145 = vmatpush1.msra.mxu0 0.0
    %1146 = vmatprep.subr.mxu0 0.0
    %1147 = vmatpush1.msra.mxu0 0.0
    %1148 = vmatprep.subr.mxu0 0.0
    %1149 = vmatpush1.msra.mxu0 0.0
    %1150 = vmatprep.subr.mxu0 0.0
    %1151 = vmatpush1.msra.mxu0 0.0
    %1152 = vmatprep.subr.mxu0 0.0
    %1153 = vmatpush1.msra.mxu0 0.0
    %1154 = vmatprep.subr.mxu0 0.0
    %1155 = vmatpush1.msra.mxu0 0.0
    %1156 = vmatprep.subr.mxu0 0.0
    %1157 = vmatpush1.msra.mxu0 0.0
    %1158 = vmatprep.subr.mxu0 0.0
    %1159 = vmatpush1.msra.mxu0 0.0
    %1160 = vmatprep.subr.mxu0 0.0
    %1161 = vmatpush1.msra.mxu0 0.0
    %1162 = vmatprep.subr.mxu0 0.0
    %1163 = vmatpush1.msra.mxu0 0.0
    %1164 = vmatprep.subr.mxu0 0.0
    %1165 = vmatpush1.msra.mxu0 0.0
    %1166 = vmatprep.mubr.f32.mxu0 0.0
    %1167 = vmatmul.mubr.f32.gmra.mrb[0].mxu0 %v1094
    %v1168 = vpop.f32.mrb[0].mxu0
    %v1169 = vadd.f32 0.0, %v1168
    %v1170 = vpop.f32.mrb[0].mxu0
    %1171 = vmatprep.mubr.f32.mxu0 0.0
    %1172 = vmatmul.mubr.f32.gmra.mrb[0].mxu0 %v1096
    %v1173 = vpop.f32.mrb[0].mxu0
    %v1174 = vadd.f32 0.0, %v1173
    %v1175 = vpop.f32.mrb[0].mxu0
    %1176 = vmatprep.mubr.f32.mxu0 0.0
    %1177 = vmatmul.mubr.f32.gmra.mrb[0].mxu0 %v1098
    %v1178 = vpop.f32.mrb[0].mxu0
    %v1179 = vadd.f32 0.0, %v1178
    %v1180 = vpop.f32.mrb[0].mxu0
    %1181 = vmatprep.mubr.f32.mxu0 0.0
    %1182 = vmatmul.mubr.f32.gmra.mrb[0].mxu0 %v1100
    %v1183 = vpop.f32.mrb[0].mxu0
    %v1184 = vadd.f32 0.0, %v1183
    %v1185 = vpop.f32.mrb[0].mxu0
    %1186 = vdwg.mxu0
    %v1187 = vrcp.pop %v1085
    %v1188 = vmul.f32 %v1085, %v1187
    %v1189 = vsub.f32 2.0, %v1188
    %v1190 = vmul.f32 %v1187, %v1189
    %v1191 = vmul.f32 %v1169, %v1190
    %v1192 = vmul.f32 %v1174, %v1190
    %v1193 = vmul.f32 %v1179, %v1190
    %v1194 = vmul.f32 %v1184, %v1190
    %1199 = vrot.lane.b32.xlu0 %v1191, 64
    %v1200 = vpop.permute.xlu0 %1199
    %1201 = vrot.lane.b32.xlu0 %v1192, 64
    %v1202 = vpop.permute.xlu0 %1201
    %1203 = vrot.lane.b32.xlu0 %v1193, 64
    %v1204 = vpop.permute.xlu0 %1203
    %1205 = vrot.lane.b32.xlu0 %v1194, 64
    %v1206 = vpop.permute.xlu0 %1205
    %1211 = vst.msk [vmem:[#allocation3] sm:$0xff] %vm236, %v1200
    %1212 = vst.msk [vmem:[#allocation3 + $0x8] sm:$0xff] %vm236, %v1202
    %1213 = vst.msk [vmem:[#allocation3 + $0x10] sm:$0xff] %vm236, %v1204
    %1214 = vst.msk [vmem:[#allocation3 + $0x18] sm:$0xff] %vm236, %v1206
    %v1215 = vld [vmem:[%s5] sm:$0xff]
    %v1216 = vld [vmem:[%s5 + $0x8] sm:$0xff]
    %v1217 = vld [vmem:[%s5 + $0x10] sm:$0xff]
    %v1218 = vld [vmem:[%s5 + $0x18] sm:$0xff]
    %v1219 = vld [vmem:[#allocation3] sm:$0xff]
    %v1220 = vld [vmem:[#allocation3 + $0x8] sm:$0xff]
    %v1221 = vld [vmem:[#allocation3 + $0x10] sm:$0xff]
    %v1222 = vld [vmem:[#allocation3 + $0x18] sm:$0xff]
    %v1223 = vld [vmem:[%s6] sm:$0xff]
    %v1224 = vld [vmem:[%s6 + $0x8] sm:$0xff]
    %v1225 = vld [vmem:[%s6 + $0x10] sm:$0xff]
    %v1226 = vld [vmem:[%s6 + $0x18] sm:$0xff]
    %1228 = vset.pattern.permute.xlu0 0
    %1229 = vperm.xlu0 %1228, %v1223
    %v1230 = vpop.permute.xlu0 %1229
    %1233 = vset.pattern.permute.xlu0 0
    %1234 = vperm.xlu0 %1233, %v1224
    %v1235 = vpop.permute.xlu0 %1234
    %1238 = vset.pattern.permute.xlu0 0
    %1239 = vperm.xlu0 %1238, %v1225
    %v1240 = vpop.permute.xlu0 %1239
    %1243 = vset.pattern.permute.xlu0 0
    %1244 = vperm.xlu0 %1243, %v1226
    %v1245 = vpop.permute.xlu0 %1244
    %v1248 = vsel %vm329, %v1215, 0
    %v1251 = vsel %vm329, %v1216, 0
    %v1254 = vsel %vm329, %v1217, 0
    %v1257 = vsel %vm329, %v1218, 0
    %1259 = vmatprep.subr.mxu0 0.0
    %1260 = vmatpush1.msra.mxu0 %v1219
    %1261 = vmatprep.subr.mxu0 0.0
    %1262 = vmatpush1.msra.mxu0 %v1220
    %1263 = vmatprep.subr.mxu0 0.0
    %1264 = vmatpush1.msra.mxu0 %v1221
    %1265 = vmatprep.subr.mxu0 0.0
    %1266 = vmatpush1.msra.mxu0 %v1222
    %1267 = vmatprep.subr.mxu0 0.0
    %1268 = vmatpush1.msra.mxu0 0.0
    %1269 = vmatprep.subr.mxu0 0.0
    %1270 = vmatpush1.msra.mxu0 0.0
    %1271 = vmatprep.subr.mxu0 0.0
    %1272 = vmatpush1.msra.mxu0 0.0
    %1273 = vmatprep.subr.mxu0 0.0
    %1274 = vmatpush1.msra.mxu0 0.0
    %1275 = vmatprep.subr.mxu0 0.0
    %1276 = vmatpush1.msra.mxu0 0.0
    %1277 = vmatprep.subr.mxu0 0.0
    %1278 = vmatpush1.msra.mxu0 0.0
    %1279 = vmatprep.subr.mxu0 0.0
    %1280 = vmatpush1.msra.mxu0 0.0
    %1281 = vmatprep.subr.mxu0 0.0
    %1282 = vmatpush1.msra.mxu0 0.0
    %1283 = vmatprep.subr.mxu0 0.0
    %1284 = vmatpush1.msra.mxu0 0.0
    %1285 = vmatprep.subr.mxu0 0.0
    %1286 = vmatpush1.msra.mxu0 0.0
    %1287 = vmatprep.subr.mxu0 0.0
    %1288 = vmatpush1.msra.mxu0 0.0
    %1289 = vmatprep.subr.mxu0 0.0
    %1290 = vmatpush1.msra.mxu0 0.0
    %1291 = vmatprep.subr.mxu0 0.0
    %1292 = vmatpush1.msra.mxu0 0.0
    %1293 = vmatprep.subr.mxu0 0.0
    %1294 = vmatpush1.msra.mxu0 0.0
    %1295 = vmatprep.subr.mxu0 0.0
    %1296 = vmatpush1.msra.mxu0 0.0
    %1297 = vmatprep.subr.mxu0 0.0
    %1298 = vmatpush1.msra.mxu0 0.0
    %1299 = vmatprep.subr.mxu0 0.0
    %1300 = vmatpush1.msra.mxu0 0.0
    %1301 = vmatprep.subr.mxu0 0.0
    %1302 = vmatpush1.msra.mxu0 0.0
    %1303 = vmatprep.subr.mxu0 0.0
    %1304 = vmatpush1.msra.mxu0 0.0
    %1305 = vmatprep.subr.mxu0 0.0
    %1306 = vmatpush1.msra.mxu0 0.0
    %1307 = vmatprep.subr.mxu0 0.0
    %1308 = vmatpush1.msra.mxu0 0.0
    %1309 = vmatprep.subr.mxu0 0.0
    %1310 = vmatpush1.msra.mxu0 0.0
    %1311 = vmatprep.subr.mxu0 0.0
    %1312 = vmatpush1.msra.mxu0 0.0
    %1313 = vmatprep.subr.mxu0 0.0
    %1314 = vmatpush1.msra.mxu0 0.0
    %1315 = vmatprep.subr.mxu0 0.0
    %1316 = vmatpush1.msra.mxu0 0.0
    %1317 = vmatprep.subr.mxu0 0.0
    %1318 = vmatpush1.msra.mxu0 0.0
    %1319 = vmatprep.subr.mxu0 0.0
    %1320 = vmatpush1.msra.mxu0 0.0
    %1321 = vmatprep.subr.mxu0 0.0
    %1322 = vmatpush1.msra.mxu0 0.0
    %1323 = vmatprep.mubr.f32.mxu0 0.0
    %1324 = vmatmul.mubr.f32.gmra.mrb[0].mxu0 %v1248
    %v1325 = vpop.f32.mrb[0].mxu0
    %v1326 = vadd.f32 %v1230, %v1325
    %v1327 = vpop.f32.mrb[0].mxu0
    %1328 = vmatprep.mubr.f32.mxu0 0.0
    %1329 = vmatmul.mubr.f32.gmra.mrb[0].mxu0 %v1251
    %v1330 = vpop.f32.mrb[0].mxu0
    %v1331 = vadd.f32 %v1235, %v1330
    %v1332 = vpop.f32.mrb[0].mxu0
    %1333 = vmatprep.mubr.f32.mxu0 0.0
    %1334 = vmatmul.mubr.f32.gmra.mrb[0].mxu0 %v1254
    %v1335 = vpop.f32.mrb[0].mxu0
    %v1336 = vadd.f32 %v1240, %v1335
    %v1337 = vpop.f32.mrb[0].mxu0
    %1338 = vmatprep.mubr.f32.mxu0 0.0
    %1339 = vmatmul.mubr.f32.gmra.mrb[0].mxu0 %v1257
    %v1340 = vpop.f32.mrb[0].mxu0
    %v1341 = vadd.f32 %v1245, %v1340
    %v1342 = vpop.f32.mrb[0].mxu0
    %1343 = vdwg.mxu0
    %v1344 = vadd.f32 %v1326, %v27
    %v1345 = vadd.f32 %v1331, %v28
    %v1346 = vadd.f32 %v1336, %v29
    %v1347 = vadd.f32 %v1341, %v30
    %1348 = vst [vmem:[#allocation4] sm:$0xff] %v1344
    %1349 = vst [vmem:[#allocation4 + $0x8] sm:$0xff] %v1345
    %1350 = vst [vmem:[#allocation4 + $0x10] sm:$0xff] %v1346
    %1351 = vst [vmem:[#allocation4 + $0x18] sm:$0xff] %v1347
    // Predicated region
    $region30: #{tpu_custom_call.1} parent=1 // pred_check
      _
    $region31: #{tpu_custom_call.1} parent=1 // pred_check_branch
      %1353 = sbr.rel (0) target = $region33
    $region32: #{tpu_custom_call.1} parent=1 // pred_region
      %s1355 = ssub.s32 512, 512
      %1356 = vsyncadd [#allocation5], %s1355
      %s1357 = sshll.u32 [#allocation4], 4
      %s1358 = int_to_ptr.vmem [resolvable:$true] %s1357
      %1363 = dma.vmem_to_hbm [thread:$0]  %s1358, 512, %s7, [#allocation5], 128, 128, 8
    $region33: #{tpu_custom_call.1} parent=1 // pred_fallthru
      _
    // Predicated region
    $region34: #{tpu_custom_call.1} parent=1 // pred_check
      _
    $region35: #{tpu_custom_call.1} parent=1 // pred_check_branch
      %1365 = sbr.rel (0) target = $region37
    $region36: #{tpu_custom_call.1} parent=1 // pred_region
      %1366 = dma.done [#allocation5], 512
    $region37: #{tpu_custom_call.1} parent=1 // pred_fallthru
      _
    %1367 = vsyncpa [#allocation5], 1

</llo_original>
